<compile_context>
chip_gen: v7x
topology: tpu7x:2x2x1
jax: 0.10.0
libtpu: 0.0.40
codegen_flags: <defaults>
</compile_context>

<pallas_src>
import numpy as np
import jax
import jax.numpy as jnp
from jax.experimental import pallas as pl
from jax.experimental.pallas import tpu as pltpu


# ------------------------------ Pallas kernel ------------------------------

def _lenet_fused_kernel(x_ref, m1_ref, m2_ref, w1p_ref, w2_ref, w3_ref,
                        s1_ref, t1_ref, s2_ref, t2_ref, bias_ref, o_ref):
    f32 = jnp.float32
    bf16 = jnp.bfloat16
    TB = o_ref.shape[1]                 # images per grid step
    K2 = m2_ref.shape[0]                # conv2 kernel height
    Hp2 = w1p_ref.shape[0]              # pooled spatial size after stage 2
    n_r2 = s2_ref.shape[2]              # TB * Ho2 (conv2 output rows / block)
    n_c1p = t1_ref.shape[2]             # C1 * Wp1  (84)
    n_c2p = t2_ref.shape[2]             # C2 * Wp2  (60)
    n_fc1 = w2_ref.shape[0]             # 120
    n_fc2 = w3_ref.shape[0]             # 84

    def mm(a, b):                       # bf16 x bf16 -> f32 on the MXU
        return jnp.dot(a, b, preferred_element_type=f32)

    # ---- conv1: one im2col matmul (kh shifts pre-concatenated on lanes) ----
    acc1 = mm(x_ref[0], m1_ref[...]).astype(bf16)          # (TB*Ho1, C1*Wo1)

    # ---- 2x2 max-pool (precomputed 0/1 gather mats) + bias + relu ----------
    r1 = jnp.maximum(mm(s1_ref[0], acc1), mm(s1_ref[1], acc1)).astype(bf16)
    p1 = jnp.maximum(mm(r1, t1_ref[0]), mm(r1, t1_ref[1]))
    p1 = jnp.maximum(p1 + bias_ref[0:1, 0:n_c1p], 0.0).astype(bf16)
    # p1: (TB*Hp1, C1*Wp1); rows ordered row-major across the batch
    # (global row = in_image_row * TB + image).

    # ---- conv2: kh shifts are contiguous static row slices of p1 -----------
    acc2 = jnp.zeros((n_r2, m2_ref.shape[2]), f32)
    for kh in range(K2):
        acc2 = acc2 + mm(p1[kh * TB:kh * TB + n_r2, :], m2_ref[kh])
    acc2 = acc2.astype(bf16)                               # (TB*Ho2, C2*Wo2)

    # ---- 2x2 max-pool + bias + relu ----------------------------------------
    r2 = jnp.maximum(mm(s2_ref[0], acc2), mm(s2_ref[1], acc2)).astype(bf16)
    p2 = jnp.maximum(mm(r2, t2_ref[0]), mm(r2, t2_ref[1]))
    p2 = jnp.maximum(p2 + bias_ref[1:2, 0:n_c2p], 0.0).astype(bf16)
    # p2: (TB*Hp2, C2*Wp2), same row-major-across-batch ordering.

    # ---- flatten (NCHW order folded into permuted fc1 weight) + fc1/2/3 ----
    z = jnp.zeros((TB, n_fc1), f32)
    for h in range(Hp2):
        z = z + mm(p2[h * TB:(h + 1) * TB, :], w1p_ref[h])
    h1 = jnp.maximum(z + bias_ref[2:3, 0:n_fc1], 0.0).astype(bf16)
    h2 = jnp.maximum(mm(h1, w2_ref[...]) + bias_ref[3:4, 0:n_fc2],
                     0.0).astype(bf16)
    o_ref[0] = mm(h2, w3_ref[...]) + bias_ref[4:5, :]      # (TB, 128)


# --------------------- trace-time constant constructors ---------------------

def _band_shift(k, w_in, w_out):
    """sh[kw, wo+kw, wo] = 1 (kw-banded column-shift selector)."""
    m = np.zeros((k, w_in, w_out), np.float32)
    for t in range(k):
        for v in range(w_out):
            m[t, v + t, v] = 1.0
    return m


def _col_pool(C, Wo):
    """Even/odd column selectors within each channel block: (2, C*Wo, C*Wo/2)."""
    Wp = Wo // 2
    te = np.zeros((C * Wo, C * Wp), np.float32)
    to = np.zeros((C * Wo, C * Wp), np.float32)
    for c in range(C):
        for j in range(Wp):
            te[c * Wo + 2 * j, c * Wp + j] = 1.0
            to[c * Wo + 2 * j + 1, c * Wp + j] = 1.0
    return np.stack([te, to])


def _row_pool_from_image_major(TB, Ho):
    """Input rows image*Ho+row  ->  output rows row*TB+image (even/odd)."""
    Hp = Ho // 2
    se = np.zeros((TB * Hp, TB * Ho), np.float32)
    so = np.zeros((TB * Hp, TB * Ho), np.float32)
    for t in range(TB):
        for r in range(Hp):
            se[r * TB + t, t * Ho + 2 * r] = 1.0
            so[r * TB + t, t * Ho + 2 * r + 1] = 1.0
    return np.stack([se, so])


def _row_pool_from_row_major(TB, Ho):
    """Input rows row*TB+image  ->  output rows row*TB+image (even/odd)."""
    Hp = Ho // 2
    se = np.zeros((TB * Hp, TB * Ho), np.float32)
    so = np.zeros((TB * Hp, TB * Ho), np.float32)
    for t in range(TB):
        for r in range(Hp):
            se[r * TB + t, (2 * r) * TB + t] = 1.0
            so[r * TB + t, (2 * r + 1) * TB + t] = 1.0
    return np.stack([se, so])


# ------------------------------- glue (JAX) ---------------------------------

@jax.jit
def cnn_target_1d_forward(x_nchw, params):
    f32, bf16 = jnp.float32, jnp.bfloat16
    B, Cin, H, W = x_nchw.shape
    w1 = params['conv1_w']
    w2 = params['conv2_w']
    C1, K1 = w1.shape[0], w1.shape[2]
    C2, K2 = w2.shape[0], w2.shape[2]
    Ho1, Wo1 = H - K1 + 1, W - K1 + 1
    Hp1, Wp1 = Ho1 // 2, Wo1 // 2
    Ho2, Wo2 = Hp1 - K2 + 1, Wp1 - K2 + 1
    Hp2, Wp2 = Ho2 // 2, Wo2 // 2
    n_fc1 = params['fc1_w'].shape[0]
    n_fc2 = params['fc2_w'].shape[0]
    n_out = params['fc3_w'].shape[0]
    assert params['fc1_w'].shape[1] == C2 * Hp2 * Wp2, "input must be 32x32"

    # Images per grid step: fill the MXU M dim, but keep >= 2 grid steps so
    # v7x's two TensorCores both get work, and avoid padding at tiny batch.
    TB = max(1, min(8, B // 2))
    nblk = -(-B // TB)
    B_pad = nblk * TB

    # ---- input: channel-blocked lanes + kh im2col on lanes; TB images are
    # ---- merged into the sublane dimension of each grid block.
    x_cb = jnp.transpose(x_nchw, (0, 2, 1, 3)).reshape(B, H, Cin * W)
    x_i2c = jnp.concatenate([x_cb[:, kh:kh + Ho1, :] for kh in range(K1)],
                            axis=2)                        # (B, Ho1, K1*Cin*W)
    if B_pad != B:
        x_i2c = jnp.pad(x_i2c, ((0, B_pad - B), (0, 0), (0, 0)))
    x_blk = x_i2c.reshape(nblk, TB * Ho1, K1 * Cin * W).astype(bf16)

    # ---- banded conv-weight matrices ----
    sh1 = jnp.asarray(_band_shift(K1, W, Wo1))
    m1 = jnp.einsum('oikl,lwv->kiwov', w1, sh1)
    m1 = m1.reshape(K1 * Cin * W, C1 * Wo1).astype(bf16)   # conv1: one matmul
    sh2 = jnp.asarray(_band_shift(K2, Wp1, Wo2))
    m2 = jnp.einsum('oikl,lwv->kiwov', w2, sh2)
    m2 = m2.reshape(K2, C1 * Wp1, C2 * Wo2).astype(bf16)

    # ---- fc weights (fc1 regrouped to match the kernel's (h, c, w) flatten) --
    w1p = jnp.transpose(params['fc1_w'].reshape(n_fc1, C2, Hp2, Wp2),
                        (2, 1, 3, 0)).reshape(Hp2, C2 * Wp2, n_fc1).astype(bf16)
    w2f = params['fc2_w'].T.astype(bf16)
    w3f = jnp.pad(params['fc3_w'].T, ((0, 0), (0, 128 - n_out))).astype(bf16)

    # ---- constant 0/1 pooling gather matrices (built once at trace time) ----
    s1 = jnp.asarray(_row_pool_from_image_major(TB, Ho1), dtype=bf16)
    t1 = jnp.asarray(_col_pool(C1, Wo1), dtype=bf16)
    s2 = jnp.asarray(_row_pool_from_row_major(TB, Ho2), dtype=bf16)
    t2 = jnp.asarray(_col_pool(C2, Wo2), dtype=bf16)

    # ---- all 5 biases packed into one (5, 128) f32 operand (one DMA) ----
    pad = lambda v: jnp.pad(v.astype(f32), (0, 128 - v.shape[0]))
    biases = jnp.stack([pad(jnp.repeat(params['conv1_b'], Wp1)),
                        pad(jnp.repeat(params['conv2_b'], Wp2)),
                        pad(params['fc1_b']),
                        pad(params['fc2_b']),
                        pad(params['fc3_b'])], axis=0)

    consts = (m1, m2, w1p, w2f, w3f, s1, t1, s2, t2, biases)
    flops = 2 * B_pad * (Ho1 * Wo1 * C1 * Cin * K1 * K1
                         + Ho2 * Wo2 * C2 * C1 * K2 * K2
                         + C2 * Hp2 * Wp2 * n_fc1 + n_fc1 * n_fc2
                         + n_fc2 * n_out)
    bytes_accessed = (int(x_blk.size) * 2 + B_pad * 128 * 4
                      + sum(int(np.prod(c.shape)) * c.dtype.itemsize
                            for c in consts))

    out = pl.pallas_call(
        _lenet_fused_kernel,
        out_shape=jax.ShapeDtypeStruct((nblk, TB, 128), f32),
        grid=(nblk,),
        in_specs=[
            pl.BlockSpec((1, TB * Ho1, K1 * Cin * W), lambda b: (b, 0, 0)),
            pl.BlockSpec(m1.shape, lambda b: (0, 0)),
            pl.BlockSpec(m2.shape, lambda b: (0, 0, 0)),
            pl.BlockSpec(w1p.shape, lambda b: (0, 0, 0)),
            pl.BlockSpec(w2f.shape, lambda b: (0, 0)),
            pl.BlockSpec(w3f.shape, lambda b: (0, 0)),
            pl.BlockSpec(s1.shape, lambda b: (0, 0, 0)),
            pl.BlockSpec(t1.shape, lambda b: (0, 0, 0)),
            pl.BlockSpec(s2.shape, lambda b: (0, 0, 0)),
            pl.BlockSpec(t2.shape, lambda b: (0, 0, 0)),
            pl.BlockSpec(biases.shape, lambda b: (0, 0)),
        ],
        out_specs=pl.BlockSpec((1, TB, 128), lambda b: (b, 0, 0)),
        compiler_params=pltpu.CompilerParams(
            dimension_semantics=("parallel",)),
        cost_estimate=pl.CostEstimate(flops=flops, transcendentals=0,
                                      bytes_accessed=bytes_accessed),
    )(x_blk, *consts)
    return out.reshape(B_pad, 128)[:B, :n_out]


# -------------------------- params / reference ------------------------------

def init_params(key, in_channels=1, n_kernels=6, out_dim=10):
    ks = jax.random.split(key, 10)

    def u(k, shape, fan_in):
        bound = 1.0 / float(np.sqrt(fan_in))
        return jax.random.uniform(k, shape, jnp.float32, -bound, bound)

    c1_fan = in_channels * 25
    c2_fan = n_kernels * 25
    flat = 2 * n_kernels * 5 * 5
    return {
        'conv1_w': u(ks[0], (n_kernels, in_channels, 5, 5), c1_fan),
        'conv1_b': u(ks[1], (n_kernels,), c1_fan),
        'conv2_w': u(ks[2], (2 * n_kernels, n_kernels, 5, 5), c2_fan),
        'conv2_b': u(ks[3], (2 * n_kernels,), c2_fan),
        'fc1_w': u(ks[4], (120, flat), flat),
        'fc1_b': u(ks[5], (120,), flat),
        'fc2_w': u(ks[6], (84, 120), 120),
        'fc2_b': u(ks[7], (84,), 120),
        'fc3_w': u(ks[8], (out_dim, 84), 84),
        'fc3_b': u(ks[9], (out_dim,), 84),
    }


def reference_forward(x, p):
    hi = jax.lax.Precision.HIGHEST
    y = jax.lax.conv_general_dilated(
        x, p['conv1_w'], (1, 1), 'VALID',
        dimension_numbers=('NCHW', 'OIHW', 'NCHW'), precision=hi)
    y = jnp.maximum(y + p['conv1_b'][None, :, None, None], 0.0)
    y = jax.lax.reduce_window(y, -jnp.inf, jax.lax.max,
                              (1, 1, 2, 2), (1, 1, 2, 2), 'VALID')
    y = jax.lax.conv_general_dilated(
        y, p['conv2_w'], (1, 1), 'VALID',
        dimension_numbers=('NCHW', 'OIHW', 'NCHW'), precision=hi)
    y = jnp.maximum(y + p['conv2_b'][None, :, None, None], 0.0)
    y = jax.lax.reduce_window(y, -jnp.inf, jax.lax.max,
                              (1, 1, 2, 2), (1, 1, 2, 2), 'VALID')
    y = y.reshape(y.shape[0], -1)
    y = jnp.maximum(jnp.dot(y, p['fc1_w'].T, precision=hi) + p['fc1_b'], 0.0)
    y = jnp.maximum(jnp.dot(y, p['fc2_w'].T, precision=hi) + p['fc2_b'], 0.0)
    return jnp.dot(y, p['fc3_w'].T, precision=hi) + p['fc3_b']


if __name__ == "__main__":
    # fc1 expects 2*n_kernels*5*5 features, which pins the input spatial size
    # to 32x32 (32 -conv5-> 28 -pool-> 14 -conv5-> 10 -pool-> 5).
    B, C_IN, H, W = 2, 1, 32, 32
    key = jax.random.PRNGKey(0)
    kx, kp = jax.random.split(key)
    x = jax.random.normal(kx, (B, C_IN, H, W), jnp.float32)
    params = init_params(kp, in_channels=C_IN, n_kernels=6, out_dim=10)

    out = jax.block_until_ready(cnn_target_1d_forward(x, params))
    assert out.shape == (B, 10), out.shape

    ref = jax.block_until_ready(reference_forward(x, params))
    np.testing.assert_allclose(np.asarray(out), np.asarray(ref),
                               rtol=2e-2, atol=2e-2)
    print("KERNEL_OK")
</pallas_src>

<mosaic_0001>
module attributes {stable_mosaic.version = 11 : i64} {
  func.func @_lenet_fused_kernel(%arg0: i32, %arg1: memref<1x28x160xbf16, #tpu.memory_space<vmem>>, %arg2: memref<160x168xbf16, #tpu.memory_space<vmem>>, %arg3: memref<5x84x120xbf16, #tpu.memory_space<vmem>>, %arg4: memref<5x60x120xbf16, #tpu.memory_space<vmem>>, %arg5: memref<120x84xbf16, #tpu.memory_space<vmem>>, %arg6: memref<84x128xbf16, #tpu.memory_space<vmem>>, %arg7: memref<2x14x28xbf16, #tpu.memory_space<vmem>>, %arg8: memref<2x168x84xbf16, #tpu.memory_space<vmem>>, %arg9: memref<2x5x10xbf16, #tpu.memory_space<vmem>>, %arg10: memref<2x120x60xbf16, #tpu.memory_space<vmem>>, %arg11: memref<5x128xf32, #tpu.memory_space<vmem>>, %arg12: memref<1x1x128xf32, #tpu.memory_space<vmem>>) attributes {dimension_semantics = [#tpu.dimension_semantics<parallel>], iteration_bounds = array<i64: 2>, scalar_prefetch = 0 : i64, scratch_operands = 0 : i64, tpu.core_type = #tpu.core_type<tc>, window_params = [{transform_indices = @transform_0, window_bounds = array<i64: 1, 28, 160>}, {pipeline_mode = #tpu.pipeline_mode<synchronous>, transform_indices = @transform_1, window_bounds = array<i64: 160, 168>}, {pipeline_mode = #tpu.pipeline_mode<synchronous>, transform_indices = @transform_2, window_bounds = array<i64: 5, 84, 120>}, {pipeline_mode = #tpu.pipeline_mode<synchronous>, transform_indices = @transform_3, window_bounds = array<i64: 5, 60, 120>}, {pipeline_mode = #tpu.pipeline_mode<synchronous>, transform_indices = @transform_4, window_bounds = array<i64: 120, 84>}, {pipeline_mode = #tpu.pipeline_mode<synchronous>, transform_indices = @transform_5, window_bounds = array<i64: 84, 128>}, {pipeline_mode = #tpu.pipeline_mode<synchronous>, transform_indices = @transform_6, window_bounds = array<i64: 2, 14, 28>}, {pipeline_mode = #tpu.pipeline_mode<synchronous>, transform_indices = @transform_7, window_bounds = array<i64: 2, 168, 84>}, {pipeline_mode = #tpu.pipeline_mode<synchronous>, transform_indices = @transform_8, window_bounds = array<i64: 2, 5, 10>}, {pipeline_mode = #tpu.pipeline_mode<synchronous>, transform_indices = @transform_9, window_bounds = array<i64: 2, 120, 60>}, {pipeline_mode = #tpu.pipeline_mode<synchronous>, transform_indices = @transform_10, window_bounds = array<i64: 5, 128>}, {transform_indices = @transform_11, window_bounds = array<i64: 1, 1, 128>}]} {
    %c0 = arith.constant 0 : index
    %c0_0 = arith.constant 0 : index
    %c0_1 = arith.constant 0 : index
    %0 = vector.load %arg1[%c0, %c0_0, %c0_1] : memref<1x28x160xbf16, #tpu.memory_space<vmem>>, vector<1x28x160xbf16>
    %1 = vector.shape_cast %0 : vector<1x28x160xbf16> to vector<28x160xbf16>
    %c0_2 = arith.constant 0 : index
    %c0_3 = arith.constant 0 : index
    %2 = vector.load %arg2[%c0_2, %c0_3] : memref<160x168xbf16, #tpu.memory_space<vmem>>, vector<160x168xbf16>
    %cst = arith.constant dense<0.000000e+00> : vector<28x168xf32>
    %3 = tpu.matmul %1, %2, %cst {dimension_numbers = #tpu.dot_dimension_numbers<[1], [0], [0], [1], [0, 0, 1, 1], [], []>} : vector<28x160xbf16>, vector<160x168xbf16>, vector<28x168xf32> -> vector<28x168xf32>
    %4 = arith.truncf %3 : vector<28x168xf32> to vector<28x168xbf16>
    %c0_4 = arith.constant 0 : index
    %c0_5 = arith.constant 0 : index
    %c0_6 = arith.constant 0 : index
    %5 = vector.load %arg7[%c0_4, %c0_5, %c0_6] : memref<2x14x28xbf16, #tpu.memory_space<vmem>>, vector<1x14x28xbf16>
    %6 = vector.shape_cast %5 : vector<1x14x28xbf16> to vector<14x28xbf16>
    %cst_7 = arith.constant dense<0.000000e+00> : vector<14x168xf32>
    %7 = tpu.matmul %6, %4, %cst_7 {dimension_numbers = #tpu.dot_dimension_numbers<[1], [0], [0], [1], [0, 0, 1, 1], [], []>} : vector<14x28xbf16>, vector<28x168xbf16>, vector<14x168xf32> -> vector<14x168xf32>
    %c1 = arith.constant 1 : index
    %c0_8 = arith.constant 0 : index
    %c0_9 = arith.constant 0 : index
    %8 = vector.load %arg7[%c1, %c0_8, %c0_9] : memref<2x14x28xbf16, #tpu.memory_space<vmem>>, vector<1x14x28xbf16>
    %9 = vector.shape_cast %8 : vector<1x14x28xbf16> to vector<14x28xbf16>
    %cst_10 = arith.constant dense<0.000000e+00> : vector<14x168xf32>
    %10 = tpu.matmul %9, %4, %cst_10 {dimension_numbers = #tpu.dot_dimension_numbers<[1], [0], [0], [1], [0, 0, 1, 1], [], []>} : vector<14x28xbf16>, vector<28x168xbf16>, vector<14x168xf32> -> vector<14x168xf32>
    %11 = arith.maximumf %7, %10 : vector<14x168xf32>
    %12 = arith.truncf %11 : vector<14x168xf32> to vector<14x168xbf16>
    %c0_11 = arith.constant 0 : index
    %c0_12 = arith.constant 0 : index
    %c0_13 = arith.constant 0 : index
    %13 = vector.load %arg8[%c0_11, %c0_12, %c0_13] : memref<2x168x84xbf16, #tpu.memory_space<vmem>>, vector<1x168x84xbf16>
    %14 = vector.shape_cast %13 : vector<1x168x84xbf16> to vector<168x84xbf16>
    %cst_14 = arith.constant dense<0.000000e+00> : vector<14x84xf32>
    %15 = tpu.matmul %12, %14, %cst_14 {dimension_numbers = #tpu.dot_dimension_numbers<[1], [0], [0], [1], [0, 0, 1, 1], [], []>} : vector<14x168xbf16>, vector<168x84xbf16>, vector<14x84xf32> -> vector<14x84xf32>
    %c1_15 = arith.constant 1 : index
    %c0_16 = arith.constant 0 : index
    %c0_17 = arith.constant 0 : index
    %16 = vector.load %arg8[%c1_15, %c0_16, %c0_17] : memref<2x168x84xbf16, #tpu.memory_space<vmem>>, vector<1x168x84xbf16>
    %17 = vector.shape_cast %16 : vector<1x168x84xbf16> to vector<168x84xbf16>
    %cst_18 = arith.constant dense<0.000000e+00> : vector<14x84xf32>
    %18 = tpu.matmul %12, %17, %cst_18 {dimension_numbers = #tpu.dot_dimension_numbers<[1], [0], [0], [1], [0, 0, 1, 1], [], []>} : vector<14x168xbf16>, vector<168x84xbf16>, vector<14x84xf32> -> vector<14x84xf32>
    %19 = arith.maximumf %15, %18 : vector<14x84xf32>
    %c0_19 = arith.constant 0 : index
    %c0_20 = arith.constant 0 : index
    %20 = vector.load %arg11[%c0_19, %c0_20] : memref<5x128xf32, #tpu.memory_space<vmem>>, vector<1x84xf32>
    %21 = vector.broadcast %20 : vector<1x84xf32> to vector<14x84xf32>
    %22 = arith.addf %19, %21 : vector<14x84xf32>
    %cst_21 = arith.constant 0.000000e+00 : f32
    %23 = vector.broadcast %cst_21 : f32 to vector<14x84xf32>
    %24 = arith.maximumf %22, %23 : vector<14x84xf32>
    %25 = arith.truncf %24 : vector<14x84xf32> to vector<14x84xbf16>
    %cst_22 = arith.constant 0.000000e+00 : f32
    %26 = vector.broadcast %cst_22 : f32 to vector<10x120xf32>
    %27 = vector.extract_strided_slice %25 {offsets = [0, 0], sizes = [10, 84], strides = [1, 1]} : vector<14x84xbf16> to vector<10x84xbf16>
    %c0_23 = arith.constant 0 : index
    %c0_24 = arith.constant 0 : index
    %c0_25 = arith.constant 0 : index
    %28 = vector.load %arg3[%c0_23, %c0_24, %c0_25] : memref<5x84x120xbf16, #tpu.memory_space<vmem>>, vector<1x84x120xbf16>
    %29 = vector.shape_cast %28 : vector<1x84x120xbf16> to vector<84x120xbf16>
    %cst_26 = arith.constant dense<0.000000e+00> : vector<10x120xf32>
    %30 = tpu.matmul %27, %29, %cst_26 {dimension_numbers = #tpu.dot_dimension_numbers<[1], [0], [0], [1], [0, 0, 1, 1], [], []>} : vector<10x84xbf16>, vector<84x120xbf16>, vector<10x120xf32> -> vector<10x120xf32>
    %31 = arith.addf %26, %30 : vector<10x120xf32>
    %32 = vector.extract_strided_slice %25 {offsets = [1, 0], sizes = [10, 84], strides = [1, 1]} : vector<14x84xbf16> to vector<10x84xbf16>
    %c1_27 = arith.constant 1 : index
    %c0_28 = arith.constant 0 : index
    %c0_29 = arith.constant 0 : index
    %33 = vector.load %arg3[%c1_27, %c0_28, %c0_29] : memref<5x84x120xbf16, #tpu.memory_space<vmem>>, vector<1x84x120xbf16>
    %34 = vector.shape_cast %33 : vector<1x84x120xbf16> to vector<84x120xbf16>
    %cst_30 = arith.constant dense<0.000000e+00> : vector<10x120xf32>
    %35 = tpu.matmul %32, %34, %cst_30 {dimension_numbers = #tpu.dot_dimension_numbers<[1], [0], [0], [1], [0, 0, 1, 1], [], []>} : vector<10x84xbf16>, vector<84x120xbf16>, vector<10x120xf32> -> vector<10x120xf32>
    %36 = arith.addf %31, %35 : vector<10x120xf32>
    %37 = vector.extract_strided_slice %25 {offsets = [2, 0], sizes = [10, 84], strides = [1, 1]} : vector<14x84xbf16> to vector<10x84xbf16>
    %c2 = arith.constant 2 : index
    %c0_31 = arith.constant 0 : index
    %c0_32 = arith.constant 0 : index
    %38 = vector.load %arg3[%c2, %c0_31, %c0_32] : memref<5x84x120xbf16, #tpu.memory_space<vmem>>, vector<1x84x120xbf16>
    %39 = vector.shape_cast %38 : vector<1x84x120xbf16> to vector<84x120xbf16>
    %cst_33 = arith.constant dense<0.000000e+00> : vector<10x120xf32>
    %40 = tpu.matmul %37, %39, %cst_33 {dimension_numbers = #tpu.dot_dimension_numbers<[1], [0], [0], [1], [0, 0, 1, 1], [], []>} : vector<10x84xbf16>, vector<84x120xbf16>, vector<10x120xf32> -> vector<10x120xf32>
    %41 = arith.addf %36, %40 : vector<10x120xf32>
    %42 = vector.extract_strided_slice %25 {offsets = [3, 0], sizes = [10, 84], strides = [1, 1]} : vector<14x84xbf16> to vector<10x84xbf16>
    %c3 = arith.constant 3 : index
    %c0_34 = arith.constant 0 : index
    %c0_35 = arith.constant 0 : index
    %43 = vector.load %arg3[%c3, %c0_34, %c0_35] : memref<5x84x120xbf16, #tpu.memory_space<vmem>>, vector<1x84x120xbf16>
    %44 = vector.shape_cast %43 : vector<1x84x120xbf16> to vector<84x120xbf16>
    %cst_36 = arith.constant dense<0.000000e+00> : vector<10x120xf32>
    %45 = tpu.matmul %42, %44, %cst_36 {dimension_numbers = #tpu.dot_dimension_numbers<[1], [0], [0], [1], [0, 0, 1, 1], [], []>} : vector<10x84xbf16>, vector<84x120xbf16>, vector<10x120xf32> -> vector<10x120xf32>
    %46 = arith.addf %41, %45 : vector<10x120xf32>
    %47 = vector.extract_strided_slice %25 {offsets = [4, 0], sizes = [10, 84], strides = [1, 1]} : vector<14x84xbf16> to vector<10x84xbf16>
    %c4 = arith.constant 4 : index
    %c0_37 = arith.constant 0 : index
    %c0_38 = arith.constant 0 : index
    %48 = vector.load %arg3[%c4, %c0_37, %c0_38] : memref<5x84x120xbf16, #tpu.memory_space<vmem>>, vector<1x84x120xbf16>
    %49 = vector.shape_cast %48 : vector<1x84x120xbf16> to vector<84x120xbf16>
    %cst_39 = arith.constant dense<0.000000e+00> : vector<10x120xf32>
    %50 = tpu.matmul %47, %49, %cst_39 {dimension_numbers = #tpu.dot_dimension_numbers<[1], [0], [0], [1], [0, 0, 1, 1], [], []>} : vector<10x84xbf16>, vector<84x120xbf16>, vector<10x120xf32> -> vector<10x120xf32>
    %51 = arith.addf %46, %50 : vector<10x120xf32>
    %52 = arith.truncf %51 : vector<10x120xf32> to vector<10x120xbf16>
    %c0_40 = arith.constant 0 : index
    %c0_41 = arith.constant 0 : index
    %c0_42 = arith.constant 0 : index
    %53 = vector.load %arg9[%c0_40, %c0_41, %c0_42] : memref<2x5x10xbf16, #tpu.memory_space<vmem>>, vector<1x5x10xbf16>
    %54 = vector.shape_cast %53 : vector<1x5x10xbf16> to vector<5x10xbf16>
    %cst_43 = arith.constant dense<0.000000e+00> : vector<5x120xf32>
    %55 = tpu.matmul %54, %52, %cst_43 {dimension_numbers = #tpu.dot_dimension_numbers<[1], [0], [0], [1], [0, 0, 1, 1], [], []>} : vector<5x10xbf16>, vector<10x120xbf16>, vector<5x120xf32> -> vector<5x120xf32>
    %c1_44 = arith.constant 1 : index
    %c0_45 = arith.constant 0 : index
    %c0_46 = arith.constant 0 : index
    %56 = vector.load %arg9[%c1_44, %c0_45, %c0_46] : memref<2x5x10xbf16, #tpu.memory_space<vmem>>, vector<1x5x10xbf16>
    %57 = vector.shape_cast %56 : vector<1x5x10xbf16> to vector<5x10xbf16>
    %cst_47 = arith.constant dense<0.000000e+00> : vector<5x120xf32>
    %58 = tpu.matmul %57, %52, %cst_47 {dimension_numbers = #tpu.dot_dimension_numbers<[1], [0], [0], [1], [0, 0, 1, 1], [], []>} : vector<5x10xbf16>, vector<10x120xbf16>, vector<5x120xf32> -> vector<5x120xf32>
    %59 = arith.maximumf %55, %58 : vector<5x120xf32>
    %60 = arith.truncf %59 : vector<5x120xf32> to vector<5x120xbf16>
    %c0_48 = arith.constant 0 : index
    %c0_49 = arith.constant 0 : index
    %c0_50 = arith.constant 0 : index
    %61 = vector.load %arg10[%c0_48, %c0_49, %c0_50] : memref<2x120x60xbf16, #tpu.memory_space<vmem>>, vector<1x120x60xbf16>
    %62 = vector.shape_cast %61 : vector<1x120x60xbf16> to vector<120x60xbf16>
    %cst_51 = arith.constant dense<0.000000e+00> : vector<5x60xf32>
    %63 = tpu.matmul %60, %62, %cst_51 {dimension_numbers = #tpu.dot_dimension_numbers<[1], [0], [0], [1], [0, 0, 1, 1], [], []>} : vector<5x120xbf16>, vector<120x60xbf16>, vector<5x60xf32> -> vector<5x60xf32>
    %c1_52 = arith.constant 1 : index
    %c0_53 = arith.constant 0 : index
    %c0_54 = arith.constant 0 : index
    %64 = vector.load %arg10[%c1_52, %c0_53, %c0_54] : memref<2x120x60xbf16, #tpu.memory_space<vmem>>, vector<1x120x60xbf16>
    %65 = vector.shape_cast %64 : vector<1x120x60xbf16> to vector<120x60xbf16>
    %cst_55 = arith.constant dense<0.000000e+00> : vector<5x60xf32>
    %66 = tpu.matmul %60, %65, %cst_55 {dimension_numbers = #tpu.dot_dimension_numbers<[1], [0], [0], [1], [0, 0, 1, 1], [], []>} : vector<5x120xbf16>, vector<120x60xbf16>, vector<5x60xf32> -> vector<5x60xf32>
    %67 = arith.maximumf %63, %66 : vector<5x60xf32>
    %c1_56 = arith.constant 1 : index
    %c0_57 = arith.constant 0 : index
    %68 = vector.load %arg11[%c1_56, %c0_57] : memref<5x128xf32, #tpu.memory_space<vmem>>, vector<1x60xf32>
    %69 = vector.broadcast %68 : vector<1x60xf32> to vector<5x60xf32>
    %70 = arith.addf %67, %69 : vector<5x60xf32>
    %cst_58 = arith.constant 0.000000e+00 : f32
    %71 = vector.broadcast %cst_58 : f32 to vector<5x60xf32>
    %72 = arith.maximumf %70, %71 : vector<5x60xf32>
    %73 = arith.truncf %72 : vector<5x60xf32> to vector<5x60xbf16>
    %cst_59 = arith.constant 0.000000e+00 : f32
    %74 = vector.broadcast %cst_59 : f32 to vector<1x120xf32>
    %75 = vector.extract_strided_slice %73 {offsets = [0, 0], sizes = [1, 60], strides = [1, 1]} : vector<5x60xbf16> to vector<1x60xbf16>
    %c0_60 = arith.constant 0 : index
    %c0_61 = arith.constant 0 : index
    %c0_62 = arith.constant 0 : index
    %76 = vector.load %arg4[%c0_60, %c0_61, %c0_62] : memref<5x60x120xbf16, #tpu.memory_space<vmem>>, vector<1x60x120xbf16>
    %77 = vector.shape_cast %76 : vector<1x60x120xbf16> to vector<60x120xbf16>
    %cst_63 = arith.constant dense<0.000000e+00> : vector<1x120xf32>
    %78 = tpu.matmul %75, %77, %cst_63 {dimension_numbers = #tpu.dot_dimension_numbers<[1], [0], [0], [1], [0, 0, 1, 1], [], []>} : vector<1x60xbf16>, vector<60x120xbf16>, vector<1x120xf32> -> vector<1x120xf32>
    %79 = arith.addf %74, %78 : vector<1x120xf32>
    %80 = vector.extract_strided_slice %73 {offsets = [1, 0], sizes = [1, 60], strides = [1, 1]} : vector<5x60xbf16> to vector<1x60xbf16>
    %c1_64 = arith.constant 1 : index
    %c0_65 = arith.constant 0 : index
    %c0_66 = arith.constant 0 : index
    %81 = vector.load %arg4[%c1_64, %c0_65, %c0_66] : memref<5x60x120xbf16, #tpu.memory_space<vmem>>, vector<1x60x120xbf16>
    %82 = vector.shape_cast %81 : vector<1x60x120xbf16> to vector<60x120xbf16>
    %cst_67 = arith.constant dense<0.000000e+00> : vector<1x120xf32>
    %83 = tpu.matmul %80, %82, %cst_67 {dimension_numbers = #tpu.dot_dimension_numbers<[1], [0], [0], [1], [0, 0, 1, 1], [], []>} : vector<1x60xbf16>, vector<60x120xbf16>, vector<1x120xf32> -> vector<1x120xf32>
    %84 = arith.addf %79, %83 : vector<1x120xf32>
    %85 = vector.extract_strided_slice %73 {offsets = [2, 0], sizes = [1, 60], strides = [1, 1]} : vector<5x60xbf16> to vector<1x60xbf16>
    %c2_68 = arith.constant 2 : index
    %c0_69 = arith.constant 0 : index
    %c0_70 = arith.constant 0 : index
    %86 = vector.load %arg4[%c2_68, %c0_69, %c0_70] : memref<5x60x120xbf16, #tpu.memory_space<vmem>>, vector<1x60x120xbf16>
    %87 = vector.shape_cast %86 : vector<1x60x120xbf16> to vector<60x120xbf16>
    %cst_71 = arith.constant dense<0.000000e+00> : vector<1x120xf32>
    %88 = tpu.matmul %85, %87, %cst_71 {dimension_numbers = #tpu.dot_dimension_numbers<[1], [0], [0], [1], [0, 0, 1, 1], [], []>} : vector<1x60xbf16>, vector<60x120xbf16>, vector<1x120xf32> -> vector<1x120xf32>
    %89 = arith.addf %84, %88 : vector<1x120xf32>
    %90 = vector.extract_strided_slice %73 {offsets = [3, 0], sizes = [1, 60], strides = [1, 1]} : vector<5x60xbf16> to vector<1x60xbf16>
    %c3_72 = arith.constant 3 : index
    %c0_73 = arith.constant 0 : index
    %c0_74 = arith.constant 0 : index
    %91 = vector.load %arg4[%c3_72, %c0_73, %c0_74] : memref<5x60x120xbf16, #tpu.memory_space<vmem>>, vector<1x60x120xbf16>
    %92 = vector.shape_cast %91 : vector<1x60x120xbf16> to vector<60x120xbf16>
    %cst_75 = arith.constant dense<0.000000e+00> : vector<1x120xf32>
    %93 = tpu.matmul %90, %92, %cst_75 {dimension_numbers = #tpu.dot_dimension_numbers<[1], [0], [0], [1], [0, 0, 1, 1], [], []>} : vector<1x60xbf16>, vector<60x120xbf16>, vector<1x120xf32> -> vector<1x120xf32>
    %94 = arith.addf %89, %93 : vector<1x120xf32>
    %95 = vector.extract_strided_slice %73 {offsets = [4, 0], sizes = [1, 60], strides = [1, 1]} : vector<5x60xbf16> to vector<1x60xbf16>
    %c4_76 = arith.constant 4 : index
    %c0_77 = arith.constant 0 : index
    %c0_78 = arith.constant 0 : index
    %96 = vector.load %arg4[%c4_76, %c0_77, %c0_78] : memref<5x60x120xbf16, #tpu.memory_space<vmem>>, vector<1x60x120xbf16>
    %97 = vector.shape_cast %96 : vector<1x60x120xbf16> to vector<60x120xbf16>
    %cst_79 = arith.constant dense<0.000000e+00> : vector<1x120xf32>
    %98 = tpu.matmul %95, %97, %cst_79 {dimension_numbers = #tpu.dot_dimension_numbers<[1], [0], [0], [1], [0, 0, 1, 1], [], []>} : vector<1x60xbf16>, vector<60x120xbf16>, vector<1x120xf32> -> vector<1x120xf32>
    %99 = arith.addf %94, %98 : vector<1x120xf32>
    %c2_80 = arith.constant 2 : index
    %c0_81 = arith.constant 0 : index
    %100 = vector.load %arg11[%c2_80, %c0_81] : memref<5x128xf32, #tpu.memory_space<vmem>>, vector<1x120xf32>
    %101 = arith.addf %99, %100 : vector<1x120xf32>
    %cst_82 = arith.constant 0.000000e+00 : f32
    %102 = vector.broadcast %cst_82 : f32 to vector<1x120xf32>
    %103 = arith.maximumf %101, %102 : vector<1x120xf32>
    %104 = arith.truncf %103 : vector<1x120xf32> to vector<1x120xbf16>
    %c0_83 = arith.constant 0 : index
    %c0_84 = arith.constant 0 : index
    %105 = vector.load %arg5[%c0_83, %c0_84] : memref<120x84xbf16, #tpu.memory_space<vmem>>, vector<120x84xbf16>
    %cst_85 = arith.constant dense<0.000000e+00> : vector<1x84xf32>
    %106 = tpu.matmul %104, %105, %cst_85 {dimension_numbers = #tpu.dot_dimension_numbers<[1], [0], [0], [1], [0, 0, 1, 1], [], []>} : vector<1x120xbf16>, vector<120x84xbf16>, vector<1x84xf32> -> vector<1x84xf32>
    %c3_86 = arith.constant 3 : index
    %c0_87 = arith.constant 0 : index
    %107 = vector.load %arg11[%c3_86, %c0_87] : memref<5x128xf32, #tpu.memory_space<vmem>>, vector<1x84xf32>
    %108 = arith.addf %106, %107 : vector<1x84xf32>
    %cst_88 = arith.constant 0.000000e+00 : f32
    %109 = vector.broadcast %cst_88 : f32 to vector<1x84xf32>
    %110 = arith.maximumf %108, %109 : vector<1x84xf32>
    %111 = arith.truncf %110 : vector<1x84xf32> to vector<1x84xbf16>
    %c0_89 = arith.constant 0 : index
    %c0_90 = arith.constant 0 : index
    %112 = vector.load %arg6[%c0_89, %c0_90] : memref<84x128xbf16, #tpu.memory_space<vmem>>, vector<84x128xbf16>
    %cst_91 = arith.constant dense<0.000000e+00> : vector<1x128xf32>
    %113 = tpu.matmul %111, %112, %cst_91 {dimension_numbers = #tpu.dot_dimension_numbers<[1], [0], [0], [1], [0, 0, 1, 1], [], []>} : vector<1x84xbf16>, vector<84x128xbf16>, vector<1x128xf32> -> vector<1x128xf32>
    %c4_92 = arith.constant 4 : index
    %c0_93 = arith.constant 0 : index
    %114 = vector.load %arg11[%c4_92, %c0_93] : memref<5x128xf32, #tpu.memory_space<vmem>>, vector<1x128xf32>
    %115 = arith.addf %113, %114 : vector<1x128xf32>
    %c0_94 = arith.constant 0 : index
    %c0_95 = arith.constant 0 : index
    %c0_96 = arith.constant 0 : index
    %116 = vector.load %arg12[%c0_94, %c0_95, %c0_96] : memref<1x1x128xf32, #tpu.memory_space<vmem>>, vector<1x1x128xf32>
    %117 = vector.shape_cast %116 : vector<1x1x128xf32> to vector<1x128xf32>
    %118 = vector.shape_cast %115 : vector<1x128xf32> to vector<1x1x128xf32>
    tpu.vector_store %arg12[%c0_94, %c0_95, %c0_96], %118 {strides = array<i32>} : memref<1x1x128xf32, #tpu.memory_space<vmem>>, vector<1x1x128xf32>,
    return
  }
  func.func @transform_0(%arg0: i32) -> (i32, i32, i32) {
    %c0_i32 = arith.constant 0 : i32
    %c0_i32_0 = arith.constant 0 : i32
    %c0_i32_1 = arith.constant 0 : i32
    return %arg0, %c0_i32, %c0_i32_0 : i32, i32, i32
  }
  func.func @transform_1(%arg0: i32) -> (i32, i32) {
    %c0_i32 = arith.constant 0 : i32
    %c0_i32_0 = arith.constant 0 : i32
    %c0_i32_1 = arith.constant 0 : i32
    return %c0_i32, %c0_i32_0 : i32, i32
  }
  func.func @transform_2(%arg0: i32) -> (i32, i32, i32) {
    %c0_i32 = arith.constant 0 : i32
    %c0_i32_0 = arith.constant 0 : i32
    %c0_i32_1 = arith.constant 0 : i32
    %c0_i32_2 = arith.constant 0 : i32
    return %c0_i32, %c0_i32_0, %c0_i32_1 : i32, i32, i32
  }
  func.func @transform_3(%arg0: i32) -> (i32, i32, i32) {
    %c0_i32 = arith.constant 0 : i32
    %c0_i32_0 = arith.constant 0 : i32
    %c0_i32_1 = arith.constant 0 : i32
    %c0_i32_2 = arith.constant 0 : i32
    return %c0_i32, %c0_i32_0, %c0_i32_1 : i32, i32, i32
  }
  func.func @transform_4(%arg0: i32) -> (i32, i32) {
    %c0_i32 = arith.constant 0 : i32
    %c0_i32_0 = arith.constant 0 : i32
    %c0_i32_1 = arith.constant 0 : i32
    return %c0_i32, %c0_i32_0 : i32, i32
  }
  func.func @transform_5(%arg0: i32) -> (i32, i32) {
    %c0_i32 = arith.constant 0 : i32
    %c0_i32_0 = arith.constant 0 : i32
    %c0_i32_1 = arith.constant 0 : i32
    return %c0_i32, %c0_i32_0 : i32, i32
  }
  func.func @transform_6(%arg0: i32) -> (i32, i32, i32) {
    %c0_i32 = arith.constant 0 : i32
    %c0_i32_0 = arith.constant 0 : i32
    %c0_i32_1 = arith.constant 0 : i32
    %c0_i32_2 = arith.constant 0 : i32
    return %c0_i32, %c0_i32_0, %c0_i32_1 : i32, i32, i32
  }
  func.func @transform_7(%arg0: i32) -> (i32, i32, i32) {
    %c0_i32 = arith.constant 0 : i32
    %c0_i32_0 = arith.constant 0 : i32
    %c0_i32_1 = arith.constant 0 : i32
    %c0_i32_2 = arith.constant 0 : i32
    return %c0_i32, %c0_i32_0, %c0_i32_1 : i32, i32, i32
  }
  func.func @transform_8(%arg0: i32) -> (i32, i32, i32) {
    %c0_i32 = arith.constant 0 : i32
    %c0_i32_0 = arith.constant 0 : i32
    %c0_i32_1 = arith.constant 0 : i32
    %c0_i32_2 = arith.constant 0 : i32
    return %c0_i32, %c0_i32_0, %c0_i32_1 : i32, i32, i32
  }
  func.func @transform_9(%arg0: i32) -> (i32, i32, i32) {
    %c0_i32 = arith.constant 0 : i32
    %c0_i32_0 = arith.constant 0 : i32
    %c0_i32_1 = arith.constant 0 : i32
    %c0_i32_2 = arith.constant 0 : i32
    return %c0_i32, %c0_i32_0, %c0_i32_1 : i32, i32, i32
  }
  func.func @transform_10(%arg0: i32) -> (i32, i32) {
    %c0_i32 = arith.constant 0 : i32
    %c0_i32_0 = arith.constant 0 : i32
    %c0_i32_1 = arith.constant 0 : i32
    return %c0_i32, %c0_i32_0 : i32, i32
  }
  func.func @transform_11(%arg0: i32) -> (i32, i32, i32) {
    %c0_i32 = arith.constant 0 : i32
    %c0_i32_0 = arith.constant 0 : i32
    %c0_i32_1 = arith.constant 0 : i32
    return %arg0, %c0_i32, %c0_i32_0 : i32, i32, i32
  }
}

</mosaic_0001>

<llo_original>
// kernel: cnn_target_1d_forward.1
$region0: #{cnn_target_1d_forward.1}
  #allocation0 [shape = 'u32[]', space=smem, size = 0x4, offset = 0x4, fixed_abs, tag = 'smem constant byte address 0x4 - core index']
  #allocation1 [shape = 'u32[144,128]{1,0:T(1,128)}', space=vmem, size = 0x12000, scoped, tag = 'internal scratch']
  %s0 = inlined_call_operand.vmem [shape: bf16[2,28,160], index: 0, kind: input, shape index: {}]
  %s1 = inlined_call_operand.vmem [shape: bf16[160,168], index: 1, kind: input, shape index: {}]
  %s2 = inlined_call_operand.vmem [shape: bf16[5,84,120], index: 2, kind: input, shape index: {}]
  %s3 = inlined_call_operand.vmem [shape: bf16[5,60,120], index: 3, kind: input, shape index: {}]
  %s4 = inlined_call_operand.vmem [shape: bf16[120,84], index: 4, kind: input, shape index: {}]
  %s5 = inlined_call_operand.vmem [shape: bf16[84,128], index: 5, kind: input, shape index: {}]
  %s6 = inlined_call_operand.vmem [shape: bf16[2,14,28], index: 6, kind: input, shape index: {}]
  %s7 = inlined_call_operand.vmem [shape: bf16[2,168,84], index: 7, kind: input, shape index: {}]
  %s8 = inlined_call_operand.vmem [shape: bf16[2,5,10], index: 8, kind: input, shape index: {}]
  %s9 = inlined_call_operand.vmem [shape: bf16[2,120,60], index: 9, kind: input, shape index: {}]
  %s10 = inlined_call_operand.vmem [shape: f32[5,128], index: 10, kind: input, shape index: {}]
  %s11 = inlined_call_operand.hbm [shape: f32[2,1,128], index: 11, kind: output, shape index: {}]
  %s12 = sld [smem:[#allocation0]]
  $region77: #{cnn_target_1d_forward.1} parent=0
    _
  %s14 = ssub.s32 1, %s12
  %s15 = scalar_select 0, %s14, %s12
  $region1: #{cnn_target_1d_forward.1} parent=0
    #allocation2 [shape = 'u8[1024]{0}', space=vmem, size = 0x400, scoped, tag = 'output window, operand 0']
    #allocation3 [shape = 's32[2]{0}', space=sflag, size = 0x8, scoped, tag = 'scoped memory for cnn_target_1d_forward.1']
    %16 = vsyncpa [#allocation3], 0
    %s17 = scalar_lea.sflag [#allocation3], 1
    %18 = vsyncpa %s17, 0
    loop: start=0, step=1, limit=4
    $region2: #{cnn_target_1d_forward.1} parent=1 // loop_pre_header
      _
    $region3: #{cnn_target_1d_forward.1} parent=1 // loop_header
      %s20 = sphi 0, %s24
      %p21 = scmp.ge.s32.totalorder %s20, 4
      %s30 = sphi 0, %s32
      %s33 = sphi 0, %s30
      %s34 = sphi 0, %s33
      %s50 = sphi 0, %s34
      %s54 = sphi 0, %s54
      %s56 = sphi 0, %s54
      %s57 = sphi 0, %s56
      %s71 = sphi 0, %s57
      %s75 = sphi 0, %s75
      %s77 = sphi 0, %s75
      %s78 = sphi 0, %s77
      %s92 = sphi 0, %s78
      %s96 = sphi 0, %s96
      %s98 = sphi 0, %s96
      %s99 = sphi 0, %s98
      %s113 = sphi 0, %s99
      %s117 = sphi 0, %s117
      %s119 = sphi 0, %s117
      %s120 = sphi 0, %s119
      %s134 = sphi 0, %s120
      %s138 = sphi 0, %s138
      %s140 = sphi 0, %s138
      %s141 = sphi 0, %s140
      %s155 = sphi 0, %s141
      %s159 = sphi 0, %s159
      %s161 = sphi 0, %s159
      %s162 = sphi 0, %s161
      %s176 = sphi 0, %s162
      %s180 = sphi 0, %s180
      %s182 = sphi 0, %s180
      %s183 = sphi 0, %s182
      %s197 = sphi 0, %s183
      %s201 = sphi 0, %s201
      %s203 = sphi 0, %s201
      %s204 = sphi 0, %s203
      %s218 = sphi 0, %s204
      %s222 = sphi 0, %s222
      %s224 = sphi 0, %s222
      %s225 = sphi 0, %s224
      %s239 = sphi 0, %s225
      %s243 = sphi 0, %s243
      %s245 = sphi 0, %s243
      %s246 = sphi 0, %s245
      %s260 = sphi 0, %s246
      %s266 = sphi 0, %s268
      %s269 = sphi 0, %s266
      %s270 = sphi 0, %s269
      %s286 = sphi 0, %s270
    $region4: #{cnn_target_1d_forward.1} parent=1 // loop_header_branch
      %23 = sbr.rel (%p21) target = $region8
    $region5: #{cnn_target_1d_forward.1} parent=1 // loop_body
      %s25 = ssub.s32 %s20, 1
      %s26 = ssub.s32 %s20, 2
      %s27 = sadd.s32 %s20, 1
      %s28 = ssub.s32 %s20, %s27
      %p29 = scmp.eq.s32.totalorder %s28, 0
      %s31 = sadd.s32 %s30, 1
      %s32 = scalar_select %p29, %s30, %s31
      %p35 = pneg %p29
      %p36 = scmp.eq.s32.totalorder %s20, 1
      %p37 = por %p35, %p36
      %p38 = scmp.ne.s32.totalorder %s30, %s33
      %p39 = scmp.eq.s32.totalorder %s20, 0
      %p40 = por %p38, %p39
      %p41 = scmp.ne.s32.totalorder %s30, %s33
      %p42 = scmp.eq.s32.totalorder %s25, 1
      %p43 = por %p41, %p42
      %p44 = scmp.ne.s32.totalorder %s33, %s34
      %p45 = scmp.eq.s32.totalorder %s25, 0
      %p46 = por %p44, %p45
      %p47 = scmp.ne.s32.totalorder %s33, %s34
      %p48 = scmp.eq.s32.totalorder %s26, 1
      %p49 = por %p47, %p48
      %p51 = scmp.ne.s32.totalorder %s34, %s50
      %p52 = scmp.eq.s32.totalorder %s26, 0
      %p53 = por %p51, %p52
      %s55 = sadd.s32 %s54, 1
      %p58 = scmp.eq.s32.totalorder %s20, 1
      %p59 = scmp.ne.s32.totalorder %s54, %s56
      %p60 = scmp.eq.s32.totalorder %s20, 0
      %p61 = por %p59, %p60
      %p62 = scmp.ne.s32.totalorder %s54, %s56
      %p63 = scmp.eq.s32.totalorder %s25, 1
      %p64 = por %p62, %p63
      %p65 = scmp.ne.s32.totalorder %s56, %s57
      %p66 = scmp.eq.s32.totalorder %s25, 0
      %p67 = por %p65, %p66
      %p68 = scmp.ne.s32.totalorder %s56, %s57
      %p69 = scmp.eq.s32.totalorder %s26, 1
      %p70 = por %p68, %p69
      %p72 = scmp.ne.s32.totalorder %s57, %s71
      %p73 = scmp.eq.s32.totalorder %s26, 0
      %p74 = por %p72, %p73
      %s76 = sadd.s32 %s75, 1
      %p79 = scmp.eq.s32.totalorder %s20, 1
      %p80 = scmp.ne.s32.totalorder %s75, %s77
      %p81 = scmp.eq.s32.totalorder %s20, 0
      %p82 = por %p80, %p81
      %p83 = scmp.ne.s32.totalorder %s75, %s77
      %p84 = scmp.eq.s32.totalorder %s25, 1
      %p85 = por %p83, %p84
      %p86 = scmp.ne.s32.totalorder %s77, %s78
      %p87 = scmp.eq.s32.totalorder %s25, 0
      %p88 = por %p86, %p87
      %p89 = scmp.ne.s32.totalorder %s77, %s78
      %p90 = scmp.eq.s32.totalorder %s26, 1
      %p91 = por %p89, %p90
      %p93 = scmp.ne.s32.totalorder %s78, %s92
      %p94 = scmp.eq.s32.totalorder %s26, 0
      %p95 = por %p93, %p94
      %s97 = sadd.s32 %s96, 1
      %p100 = scmp.eq.s32.totalorder %s20, 1
      %p101 = scmp.ne.s32.totalorder %s96, %s98
      %p102 = scmp.eq.s32.totalorder %s20, 0
      %p103 = por %p101, %p102
      %p104 = scmp.ne.s32.totalorder %s96, %s98
      %p105 = scmp.eq.s32.totalorder %s25, 1
      %p106 = por %p104, %p105
      %p107 = scmp.ne.s32.totalorder %s98, %s99
      %p108 = scmp.eq.s32.totalorder %s25, 0
      %p109 = por %p107, %p108
      %p110 = scmp.ne.s32.totalorder %s98, %s99
      %p111 = scmp.eq.s32.totalorder %s26, 1
      %p112 = por %p110, %p111
      %p114 = scmp.ne.s32.totalorder %s99, %s113
      %p115 = scmp.eq.s32.totalorder %s26, 0
      %p116 = por %p114, %p115
      %s118 = sadd.s32 %s117, 1
      %p121 = scmp.eq.s32.totalorder %s20, 1
      %p122 = scmp.ne.s32.totalorder %s117, %s119
      %p123 = scmp.eq.s32.totalorder %s20, 0
      %p124 = por %p122, %p123
      %p125 = scmp.ne.s32.totalorder %s117, %s119
      %p126 = scmp.eq.s32.totalorder %s25, 1
      %p127 = por %p125, %p126
      %p128 = scmp.ne.s32.totalorder %s119, %s120
      %p129 = scmp.eq.s32.totalorder %s25, 0
      %p130 = por %p128, %p129
      %p131 = scmp.ne.s32.totalorder %s119, %s120
      %p132 = scmp.eq.s32.totalorder %s26, 1
      %p133 = por %p131, %p132
      %p135 = scmp.ne.s32.totalorder %s120, %s134
      %p136 = scmp.eq.s32.totalorder %s26, 0
      %p137 = por %p135, %p136
      %s139 = sadd.s32 %s138, 1
      %p142 = scmp.eq.s32.totalorder %s20, 1
      %p143 = scmp.ne.s32.totalorder %s138, %s140
      %p144 = scmp.eq.s32.totalorder %s20, 0
      %p145 = por %p143, %p144
      %p146 = scmp.ne.s32.totalorder %s138, %s140
      %p147 = scmp.eq.s32.totalorder %s25, 1
      %p148 = por %p146, %p147
      %p149 = scmp.ne.s32.totalorder %s140, %s141
      %p150 = scmp.eq.s32.totalorder %s25, 0
      %p151 = por %p149, %p150
      %p152 = scmp.ne.s32.totalorder %s140, %s141
      %p153 = scmp.eq.s32.totalorder %s26, 1
      %p154 = por %p152, %p153
      %p156 = scmp.ne.s32.totalorder %s141, %s155
      %p157 = scmp.eq.s32.totalorder %s26, 0
      %p158 = por %p156, %p157
      %s160 = sadd.s32 %s159, 1
      %p163 = scmp.eq.s32.totalorder %s20, 1
      %p164 = scmp.ne.s32.totalorder %s159, %s161
      %p165 = scmp.eq.s32.totalorder %s20, 0
      %p166 = por %p164, %p165
      %p167 = scmp.ne.s32.totalorder %s159, %s161
      %p168 = scmp.eq.s32.totalorder %s25, 1
      %p169 = por %p167, %p168
      %p170 = scmp.ne.s32.totalorder %s161, %s162
      %p171 = scmp.eq.s32.totalorder %s25, 0
      %p172 = por %p170, %p171
      %p173 = scmp.ne.s32.totalorder %s161, %s162
      %p174 = scmp.eq.s32.totalorder %s26, 1
      %p175 = por %p173, %p174
      %p177 = scmp.ne.s32.totalorder %s162, %s176
      %p178 = scmp.eq.s32.totalorder %s26, 0
      %p179 = por %p177, %p178
      %s181 = sadd.s32 %s180, 1
      %p184 = scmp.eq.s32.totalorder %s20, 1
      %p185 = scmp.ne.s32.totalorder %s180, %s182
      %p186 = scmp.eq.s32.totalorder %s20, 0
      %p187 = por %p185, %p186
      %p188 = scmp.ne.s32.totalorder %s180, %s182
      %p189 = scmp.eq.s32.totalorder %s25, 1
      %p190 = por %p188, %p189
      %p191 = scmp.ne.s32.totalorder %s182, %s183
      %p192 = scmp.eq.s32.totalorder %s25, 0
      %p193 = por %p191, %p192
      %p194 = scmp.ne.s32.totalorder %s182, %s183
      %p195 = scmp.eq.s32.totalorder %s26, 1
      %p196 = por %p194, %p195
      %p198 = scmp.ne.s32.totalorder %s183, %s197
      %p199 = scmp.eq.s32.totalorder %s26, 0
      %p200 = por %p198, %p199
      %s202 = sadd.s32 %s201, 1
      %p205 = scmp.eq.s32.totalorder %s20, 1
      %p206 = scmp.ne.s32.totalorder %s201, %s203
      %p207 = scmp.eq.s32.totalorder %s20, 0
      %p208 = por %p206, %p207
      %p209 = scmp.ne.s32.totalorder %s201, %s203
      %p210 = scmp.eq.s32.totalorder %s25, 1
      %p211 = por %p209, %p210
      %p212 = scmp.ne.s32.totalorder %s203, %s204
      %p213 = scmp.eq.s32.totalorder %s25, 0
      %p214 = por %p212, %p213
      %p215 = scmp.ne.s32.totalorder %s203, %s204
      %p216 = scmp.eq.s32.totalorder %s26, 1
      %p217 = por %p215, %p216
      %p219 = scmp.ne.s32.totalorder %s204, %s218
      %p220 = scmp.eq.s32.totalorder %s26, 0
      %p221 = por %p219, %p220
      %s223 = sadd.s32 %s222, 1
      %p226 = scmp.eq.s32.totalorder %s20, 1
      %p227 = scmp.ne.s32.totalorder %s222, %s224
      %p228 = scmp.eq.s32.totalorder %s20, 0
      %p229 = por %p227, %p228
      %p230 = scmp.ne.s32.totalorder %s222, %s224
      %p231 = scmp.eq.s32.totalorder %s25, 1
      %p232 = por %p230, %p231
      %p233 = scmp.ne.s32.totalorder %s224, %s225
      %p234 = scmp.eq.s32.totalorder %s25, 0
      %p235 = por %p233, %p234
      %p236 = scmp.ne.s32.totalorder %s224, %s225
      %p237 = scmp.eq.s32.totalorder %s26, 1
      %p238 = por %p236, %p237
      %p240 = scmp.ne.s32.totalorder %s225, %s239
      %p241 = scmp.eq.s32.totalorder %s26, 0
      %p242 = por %p240, %p241
      %s244 = sadd.s32 %s243, 1
      %p247 = scmp.eq.s32.totalorder %s20, 1
      %p248 = scmp.ne.s32.totalorder %s243, %s245
      %p249 = scmp.eq.s32.totalorder %s20, 0
      %p250 = por %p248, %p249
      %p251 = scmp.ne.s32.totalorder %s243, %s245
      %p252 = scmp.eq.s32.totalorder %s25, 1
      %p253 = por %p251, %p252
      %p254 = scmp.ne.s32.totalorder %s245, %s246
      %p255 = scmp.eq.s32.totalorder %s25, 0
      %p256 = por %p254, %p255
      %p257 = scmp.ne.s32.totalorder %s245, %s246
      %p258 = scmp.eq.s32.totalorder %s26, 1
      %p259 = por %p257, %p258
      %p261 = scmp.ne.s32.totalorder %s246, %s260
      %p262 = scmp.eq.s32.totalorder %s26, 0
      %p263 = por %p261, %p262
      %s264 = ssub.s32 %s20, %s27
      %p265 = scmp.eq.s32.totalorder %s264, 0
      %s267 = sadd.s32 %s266, 1
      %s268 = scalar_select %p265, %s266, %s267
      %p271 = pneg %p265
      %p272 = scmp.eq.s32.totalorder %s20, 1
      %p273 = por %p271, %p272
      %p274 = scmp.ne.s32.totalorder %s266, %s269
      %p275 = scmp.eq.s32.totalorder %s20, 0
      %p276 = por %p274, %p275
      %p277 = scmp.ne.s32.totalorder %s266, %s269
      %p278 = scmp.eq.s32.totalorder %s25, 1
      %p279 = por %p277, %p278
      %p280 = scmp.ne.s32.totalorder %s269, %s270
      %p281 = scmp.eq.s32.totalorder %s25, 0
      %p282 = por %p280, %p281
      %p283 = scmp.ne.s32.totalorder %s269, %s270
      %p284 = scmp.eq.s32.totalorder %s26, 1
      %p285 = por %p283, %p284
      %p287 = scmp.ne.s32.totalorder %s270, %s286
      %p288 = scmp.eq.s32.totalorder %s26, 0
      %p289 = por %p287, %p288
      %p290 = scmp.le.s32.totalorder 1, %s20
      %p291 = scmp.lt.s32.totalorder %s20, 3
      %p292 = pnand %p290, %p291
      %p293 = pneg %p292
      // Predicated region
      $region9: #{cnn_target_1d_forward.1} parent=5 // pred_check
        _
      $region10: #{cnn_target_1d_forward.1} parent=5 // pred_check_branch
        %295 = sbr.rel (%p292) target = $region12
      $region11: #{cnn_target_1d_forward.1} parent=5 // pred_region
        %s296 = ssub.s32 %s20, 1
        // Predicated region
        $region13: #{cnn_target_1d_forward.1} parent=11 // pred_check
          %p297 = pneg %p67
        $region14: #{cnn_target_1d_forward.1} parent=11 // pred_check_branch
          %299 = sbr.rel (%p297) target = $region16
        $region15: #{cnn_target_1d_forward.1} parent=11 // pred_region
          _
        $region16: #{cnn_target_1d_forward.1} parent=11 // pred_fallthru
          _
        // Predicated region
        $region17: #{cnn_target_1d_forward.1} parent=11 // pred_check
          %p300 = pneg %p88
        $region18: #{cnn_target_1d_forward.1} parent=11 // pred_check_branch
          %302 = sbr.rel (%p300) target = $region20
        $region19: #{cnn_target_1d_forward.1} parent=11 // pred_region
          _
        $region20: #{cnn_target_1d_forward.1} parent=11 // pred_fallthru
          _
        // Predicated region
        $region21: #{cnn_target_1d_forward.1} parent=11 // pred_check
          %p303 = pneg %p109
        $region22: #{cnn_target_1d_forward.1} parent=11 // pred_check_branch
          %305 = sbr.rel (%p303) target = $region24
        $region23: #{cnn_target_1d_forward.1} parent=11 // pred_region
          _
        $region24: #{cnn_target_1d_forward.1} parent=11 // pred_fallthru
          _
        // Predicated region
        $region25: #{cnn_target_1d_forward.1} parent=11 // pred_check
          %p306 = pneg %p130
        $region26: #{cnn_target_1d_forward.1} parent=11 // pred_check_branch
          %308 = sbr.rel (%p306) target = $region28
        $region27: #{cnn_target_1d_forward.1} parent=11 // pred_region
          _
        $region28: #{cnn_target_1d_forward.1} parent=11 // pred_fallthru
          _
        // Predicated region
        $region29: #{cnn_target_1d_forward.1} parent=11 // pred_check
          %p309 = pneg %p151
        $region30: #{cnn_target_1d_forward.1} parent=11 // pred_check_branch
          %311 = sbr.rel (%p309) target = $region32
        $region31: #{cnn_target_1d_forward.1} parent=11 // pred_region
          _
        $region32: #{cnn_target_1d_forward.1} parent=11 // pred_fallthru
          _
        // Predicated region
        $region33: #{cnn_target_1d_forward.1} parent=11 // pred_check
          %p312 = pneg %p172
        $region34: #{cnn_target_1d_forward.1} parent=11 // pred_check_branch
          %314 = sbr.rel (%p312) target = $region36
        $region35: #{cnn_target_1d_forward.1} parent=11 // pred_region
          _
        $region36: #{cnn_target_1d_forward.1} parent=11 // pred_fallthru
          _
        // Predicated region
        $region37: #{cnn_target_1d_forward.1} parent=11 // pred_check
          %p315 = pneg %p193
        $region38: #{cnn_target_1d_forward.1} parent=11 // pred_check_branch
          %317 = sbr.rel (%p315) target = $region40
        $region39: #{cnn_target_1d_forward.1} parent=11 // pred_region
          _
        $region40: #{cnn_target_1d_forward.1} parent=11 // pred_fallthru
          _
        // Predicated region
        $region41: #{cnn_target_1d_forward.1} parent=11 // pred_check
          %p318 = pneg %p214
        $region42: #{cnn_target_1d_forward.1} parent=11 // pred_check_branch
          %320 = sbr.rel (%p318) target = $region44
        $region43: #{cnn_target_1d_forward.1} parent=11 // pred_region
          _
        $region44: #{cnn_target_1d_forward.1} parent=11 // pred_fallthru
          _
        // Predicated region
        $region45: #{cnn_target_1d_forward.1} parent=11 // pred_check
          %p321 = pneg %p235
        $region46: #{cnn_target_1d_forward.1} parent=11 // pred_check_branch
          %323 = sbr.rel (%p321) target = $region48
        $region47: #{cnn_target_1d_forward.1} parent=11 // pred_region
          _
        $region48: #{cnn_target_1d_forward.1} parent=11 // pred_fallthru
          _
        // Predicated region
        $region49: #{cnn_target_1d_forward.1} parent=11 // pred_check
          %p324 = pneg %p256
        $region50: #{cnn_target_1d_forward.1} parent=11 // pred_check_branch
          %326 = sbr.rel (%p324) target = $region52
        $region51: #{cnn_target_1d_forward.1} parent=11 // pred_region
          _
        $region52: #{cnn_target_1d_forward.1} parent=11 // pred_fallthru
          _
      $region12: #{cnn_target_1d_forward.1} parent=5 // pred_fallthru
        _
      %p327 = scmp.lt.s32.totalorder %s20, 2
      // Predicated region
      $region53: #{cnn_target_1d_forward.1} parent=5 // pred_check
        %p328 = pneg %p327
      $region54: #{cnn_target_1d_forward.1} parent=5 // pred_check_branch
        %330 = sbr.rel (%p328) target = $region56
      $region55: #{cnn_target_1d_forward.1} parent=5 // pred_region
        // Predicated region
        $region57: #{cnn_target_1d_forward.1} parent=55 // pred_check
          %p331 = pneg %p40
        $region58: #{cnn_target_1d_forward.1} parent=55 // pred_check_branch
          %333 = sbr.rel (%p331) target = $region60
        $region59: #{cnn_target_1d_forward.1} parent=55 // pred_region
          %p334 = scmp.lt.s32.totalorder %s20, 1
          %s335 = scalar_select %p334, %s20, 1
          %s336 = smul.addr %s335, 8
          %s337 = smul.addr %s336, 4
          %s338 = scalar_lea.vmem %s0, %s337
        $region60: #{cnn_target_1d_forward.1} parent=55 // pred_fallthru
          _
      $region56: #{cnn_target_1d_forward.1} parent=5 // pred_fallthru
        _
      %p339 = scmp.le.s32.totalorder 1, %s20
      %p340 = scmp.lt.s32.totalorder %s20, 3
      %p341 = pnand %p339, %p340
      %p342 = pneg %p341
      // Predicated region
      $region61: #{cnn_target_1d_forward.1} parent=5 // pred_check
        _
      $region62: #{cnn_target_1d_forward.1} parent=5 // pred_check_branch
        %344 = sbr.rel (%p341) target = $region64
      $region63: #{cnn_target_1d_forward.1} parent=5 // pred_region
        %s345 = ssub.s32 %s20, 1
        %p346 = scmp.lt.s32.totalorder %s25, 1
        %s347 = scalar_select %p346, %s25, 1
        %s348 = smul.addr %s347, 8
        %s349 = smul.addr %s348, 4
        %s350 = scalar_lea.vmem %s0, %s349
        %p351 = pneg %p46
        %p352 = pneg %p43
        %p353 = pneg %p67
        %p354 = pneg %p64
        %p355 = pneg %p88
        %p356 = pneg %p85
        %p357 = pneg %p109
        %p358 = pneg %p106
        %p359 = pneg %p130
        %p360 = pneg %p127
        %p361 = pneg %p151
        %p362 = pneg %p148
        %p363 = pneg %p172
        %p364 = pneg %p169
        %p365 = pneg %p193
        %p366 = pneg %p190
        %p367 = pneg %p214
        %p368 = pneg %p211
        %p369 = pneg %p235
        %p370 = pneg %p232
        %p371 = pneg %p256
        %p372 = pneg %p253
        %p373 = pneg %p282
        %p374 = pneg %p279
        %s375 = sand.u32 %s269, 1
        %s376 = scalar_lea.sflag [#allocation3], %s375
        %s377 = sand.u32 %s269, 1
        %s378 = scalar_lea.vmem [#allocation2], %s377
        %p379 = scmp.lt.s32.totalorder %s25, 1
        %s380 = scalar_select %p379, %s25, 1
        %s381 = smul.addr %s380, 8
        %s382 = smul.addr %s381, 4
        %s383 = scalar_lea.vmem %s0, %s382
        %v385 = vld [vmem:[%s383] sm:$0xff]
        %v386 = vld [vmem:[%s383 + $0x8] sm:$0xff]
        %v387 = vld [vmem:[%s383 + $0x10] sm:$0xff]
        %v388 = vld [vmem:[%s383 + $0x18] sm:$0x33]
        %v389 = vld [vmem:[%s1] sm:$0xff]
        %v390 = vld [vmem:[%s1 + $0x8] sm:$0xff]
        %v391 = vld [vmem:[%s1 + $0x10] sm:$0xff]
        %v392 = vld [vmem:[%s1 + $0x18] sm:$0xff]
        %v393 = vld [vmem:[%s1 + $0x20] sm:$0xff]
        %v394 = vld [vmem:[%s1 + $0x28] sm:$0xff]
        %v395 = vld [vmem:[%s1 + $0x30] sm:$0xff]
        %v396 = vld [vmem:[%s1 + $0x38] sm:$0xff]
        %v397 = vld [vmem:[%s1 + $0x40] sm:$0xff]
        %v398 = vld [vmem:[%s1 + $0x48] sm:$0xff]
        %v399 = vld [vmem:[%s1 + $0x50] sm:$0xff]
        %v400 = vld [vmem:[%s1 + $0x58] sm:$0xff]
        %v401 = vld [vmem:[%s1 + $0x60] sm:$0xff]
        %v402 = vld [vmem:[%s1 + $0x68] sm:$0xff]
        %v403 = vld [vmem:[%s1 + $0x70] sm:$0xff]
        %v404 = vld [vmem:[%s1 + $0x78] sm:$0xff]
        %v405 = vld [vmem:[%s1 + $0x80] sm:$0xff]
        %v406 = vld [vmem:[%s1 + $0x88] sm:$0xff]
        %v407 = vld [vmem:[%s1 + $0x90] sm:$0xff]
        %v408 = vld [vmem:[%s1 + $0x98] sm:$0xff]
        %v413 = vunpack.c.l.b16 %v385
        %v414 = vunpack.c.h.b16 %v385
        %v415 = vunpack.c.l.b16 %v386
        %v416 = vunpack.c.h.b16 %v386
        %v417 = vunpack.c.l.b16 %v387
        %v418 = vunpack.c.h.b16 %v387
        %v419 = vunpack.c.l.b16 %v388
        %v420 = vunpack.c.h.b16 %v388
        %v421 = vpack.c.b16 %v415, %v413
        %v422 = vpack.c.b16 %v416, %v414
        %v423 = vpack.c.b16 %v419, %v417
        %v424 = vpack.c.b16 %v420, %v418
        %v447 = vunpack.c.l.b16 %v389
        %v448 = vunpack.c.h.b16 %v389
        %v449 = vunpack.c.l.b16 %v390
        %v450 = vunpack.c.h.b16 %v390
        %v451 = vunpack.c.l.b16 %v391
        %v452 = vunpack.c.h.b16 %v391
        %v453 = vunpack.c.l.b16 %v392
        %v454 = vunpack.c.h.b16 %v392
        %v455 = vunpack.c.l.b16 %v393
        %v456 = vunpack.c.h.b16 %v393
        %v457 = vunpack.c.l.b16 %v394
        %v458 = vunpack.c.h.b16 %v394
        %v459 = vunpack.c.l.b16 %v395
        %v460 = vunpack.c.h.b16 %v395
        %v461 = vunpack.c.l.b16 %v396
        %v462 = vunpack.c.h.b16 %v396
        %v463 = vunpack.c.l.b16 %v397
        %v464 = vunpack.c.h.b16 %v397
        %v465 = vunpack.c.l.b16 %v398
        %v466 = vunpack.c.h.b16 %v398
        %v467 = vunpack.c.l.b16 %v399
        %v468 = vunpack.c.h.b16 %v399
        %v469 = vunpack.c.l.b16 %v400
        %v470 = vunpack.c.h.b16 %v400
        %v471 = vunpack.c.l.b16 %v401
        %v472 = vunpack.c.h.b16 %v401
        %v473 = vunpack.c.l.b16 %v402
        %v474 = vunpack.c.h.b16 %v402
        %v475 = vunpack.c.l.b16 %v403
        %v476 = vunpack.c.h.b16 %v403
        %v477 = vunpack.c.l.b16 %v404
        %v478 = vunpack.c.h.b16 %v404
        %v479 = vunpack.c.l.b16 %v405
        %v480 = vunpack.c.h.b16 %v405
        %v481 = vunpack.c.l.b16 %v406
        %v482 = vunpack.c.h.b16 %v406
        %v483 = vunpack.c.l.b16 %v407
        %v484 = vunpack.c.h.b16 %v407
        %v485 = vunpack.c.l.b16 %v408
        %v486 = vunpack.c.h.b16 %v408
        %v487 = vpack.c.b16 %v449, %v447
        %v488 = vpack.c.b16 %v450, %v448
        %v489 = vpack.c.b16 %v453, %v451
        %v490 = vpack.c.b16 %v454, %v452
        %v491 = vpack.c.b16 %v457, %v455
        %v492 = vpack.c.b16 %v458, %v456
        %v493 = vpack.c.b16 %v461, %v459
        %v494 = vpack.c.b16 %v462, %v460
        %v495 = vpack.c.b16 %v465, %v463
        %v496 = vpack.c.b16 %v466, %v464
        %v497 = vpack.c.b16 %v469, %v467
        %v498 = vpack.c.b16 %v470, %v468
        %v499 = vpack.c.b16 %v473, %v471
        %v500 = vpack.c.b16 %v474, %v472
        %v501 = vpack.c.b16 %v477, %v475
        %v502 = vpack.c.b16 %v478, %v476
        %v503 = vpack.c.b16 %v481, %v479
        %v504 = vpack.c.b16 %v482, %v480
        %v505 = vpack.c.b16 %v485, %v483
        %v506 = vpack.c.b16 %v486, %v484
        %vm527 = vcmask 261120
        %v529 = vsel %vm527, %v422, 0
        %v532 = vsel %vm527, %v424, 0
        %534 = vmatprep.subr.bf16.mxu0 %v488
        %535 = vmatpush1.bf16.msra.mxu0 %v487
        %536 = vmatprep.subr.bf16.mxu0 %v490
        %537 = vmatpush1.bf16.msra.mxu0 %v489
        %538 = vmatprep.subr.bf16.mxu0 %v492
        %539 = vmatpush1.bf16.msra.mxu0 %v491
        %540 = vmatprep.subr.bf16.mxu0 %v494
        %541 = vmatpush1.bf16.msra.mxu0 %v493
        %542 = vmatprep.subr.bf16.mxu0 %v496
        %543 = vmatpush1.bf16.msra.mxu0 %v495
        %544 = vmatprep.subr.bf16.mxu0 %v498
        %545 = vmatpush1.bf16.msra.mxu0 %v497
        %546 = vmatprep.subr.bf16.mxu0 %v500
        %547 = vmatpush1.bf16.msra.mxu0 %v499
        %548 = vmatprep.subr.bf16.mxu0 %v502
        %549 = vmatpush1.bf16.msra.mxu0 %v501
        %550 = vmatprep.subr.bf16.mxu0 %v504
        %551 = vmatpush1.bf16.msra.mxu0 %v503
        %552 = vmatprep.subr.bf16.mxu0 %v506
        %553 = vmatpush1.bf16.msra.mxu0 %v505
        %554 = vmatprep.subr.bf16.mxu0 0
        %555 = vmatpush1.bf16.msra.mxu0 0
        %556 = vmatprep.subr.bf16.mxu0 0
        %557 = vmatpush1.bf16.msra.mxu0 0
        %558 = vmatprep.subr.bf16.mxu0 0
        %559 = vmatpush1.bf16.msra.mxu0 0
        %560 = vmatprep.subr.bf16.mxu0 0
        %561 = vmatpush1.bf16.msra.mxu0 0
        %562 = vmatprep.subr.bf16.mxu0 0
        %563 = vmatpush1.bf16.msra.mxu0 0
        %564 = vmatprep.subr.bf16.mxu0 0
        %565 = vmatpush1.bf16.msra.mxu0 0
        %566 = vmatprep.mubr.bf16.mxu0 %v529
        %567 = vmatmul.mubr.bf16.gmra.mrb[0].mxu0 %v421
        %v568 = vpop.f32.mrb[0].mxu0
        %v569 = vadd.f32 0.0, %v568
        %v570 = vpop.f32.mrb[0].mxu0
        %v571 = vadd.f32 0.0, %v570
        %v572 = vpop.f32.mrb[0].mxu0
        %v573 = vadd.f32 0.0, %v572
        %v574 = vpop.f32.mrb[0].mxu0
        %v575 = vadd.f32 0.0, %v574
        %576 = vmatprep.mubr.bf16.mxu0 %v532
        %577 = vmatmul.mubr.bf16.gmra.mrb[0].mxu0 %v423
        %v578 = vpop.f32.mrb[0].mxu0
        %v579 = vadd.f32 0.0, %v578
        %v580 = vpop.f32.mrb[0].mxu0
        %v581 = vadd.f32 0.0, %v580
        %v582 = vpop.f32.mrb[0].mxu0
        %v583 = vadd.f32 0.0, %v582
        %v584 = vpop.f32.mrb[0].mxu0
        %v585 = vadd.f32 0.0, %v584
        %586 = vdwg.mxu0
        %v587 = vpack.c.bf16 %v573, %v569
        %v588 = vpack.c.bf16 %v575, %v571
        %v589 = vpack.c.bf16 %v583, %v579
        %v590 = vpack.c.bf16 %v585, %v581
        %v591 = vld [vmem:[%s6] sm:$0xf]
        %v592 = vld [vmem:[%s6 + $0x4] sm:$0x7]
        %v595 = vunpack.c.l.b16 %v591
        %v596 = vunpack.c.l.b16 %v592
        %v597 = vpack.c.b16 %v596, %v595
        %vm598 = vcmask 228352
        %v600 = vsel %vm598, %v597, 0
        %vm602 = vcmask 1045504
        %v604 = vsel %vm602, %v589, 0
        %v607 = vsel %vm602, %v590, 0
        %609 = vmatprep.subr.bf16.mxu0 %v588
        %610 = vmatpush1.bf16.msra.mxu0 %v587
        %611 = vmatprep.subr.bf16.mxu0 %v607
        %612 = vmatpush1.bf16.msra.mxu0 %v604
        %613 = vmatprep.subr.bf16.mxu0 0
        %614 = vmatpush1.bf16.msra.mxu0 0
        %615 = vmatprep.subr.bf16.mxu0 0
        %616 = vmatpush1.bf16.msra.mxu0 0
        %617 = vmatprep.subr.bf16.mxu0 0
        %618 = vmatpush1.bf16.msra.mxu0 0
        %619 = vmatprep.subr.bf16.mxu0 0
        %620 = vmatpush1.bf16.msra.mxu0 0
        %621 = vmatprep.subr.bf16.mxu0 0
        %622 = vmatpush1.bf16.msra.mxu0 0
        %623 = vmatprep.subr.bf16.mxu0 0
        %624 = vmatpush1.bf16.msra.mxu0 0
        %625 = vmatprep.subr.bf16.mxu0 0
        %626 = vmatpush1.bf16.msra.mxu0 0
        %627 = vmatprep.subr.bf16.mxu0 0
        %628 = vmatpush1.bf16.msra.mxu0 0
        %629 = vmatprep.subr.bf16.mxu0 0
        %630 = vmatpush1.bf16.msra.mxu0 0
        %631 = vmatprep.subr.bf16.mxu0 0
        %632 = vmatpush1.bf16.msra.mxu0 0
        %633 = vmatprep.subr.bf16.mxu0 0
        %634 = vmatpush1.bf16.msra.mxu0 0
        %635 = vmatprep.subr.bf16.mxu0 0
        %636 = vmatpush1.bf16.msra.mxu0 0
        %637 = vmatprep.subr.bf16.mxu0 0
        %638 = vmatpush1.bf16.msra.mxu0 0
        %639 = vmatprep.subr.bf16.mxu0 0
        %640 = vmatpush1.bf16.msra.mxu0 0
        %641 = vmatprep.mubr.bf16.mxu0 0
        %642 = vmatmul.mubr.bf16.gmra.mrb[0].mxu0 %v600
        %v643 = vpop.f32.mrb[0].mxu0
        %v644 = vadd.f32 0.0, %v643
        %v645 = vpop.f32.mrb[0].mxu0
        %v646 = vadd.f32 0.0, %v645
        %v647 = vpop.f32.mrb[0].mxu0
        %v648 = vadd.f32 0.0, %v647
        %v649 = vpop.f32.mrb[0].mxu0
        %v650 = vadd.f32 0.0, %v649
        %651 = vdwg.mxu0
        %s652 = scalar_lea.vmem %s6, 8
        %v653 = vld [vmem:[%s652] sm:$0xf]
        %v654 = vld [vmem:[%s652 + $0x4] sm:$0x7]
        %v657 = vunpack.c.l.b16 %v653
        %v658 = vunpack.c.l.b16 %v654
        %v659 = vpack.c.b16 %v658, %v657
        %v661 = vsel %vm598, %v659, 0
        %663 = vmatprep.subr.bf16.mxu0 %v588
        %664 = vmatpush1.bf16.msra.mxu0 %v587
        %665 = vmatprep.subr.bf16.mxu0 %v607
        %666 = vmatpush1.bf16.msra.mxu0 %v604
        %667 = vmatprep.subr.bf16.mxu0 0
        %668 = vmatpush1.bf16.msra.mxu0 0
        %669 = vmatprep.subr.bf16.mxu0 0
        %670 = vmatpush1.bf16.msra.mxu0 0
        %671 = vmatprep.subr.bf16.mxu0 0
        %672 = vmatpush1.bf16.msra.mxu0 0
        %673 = vmatprep.subr.bf16.mxu0 0
        %674 = vmatpush1.bf16.msra.mxu0 0
        %675 = vmatprep.subr.bf16.mxu0 0
        %676 = vmatpush1.bf16.msra.mxu0 0
        %677 = vmatprep.subr.bf16.mxu0 0
        %678 = vmatpush1.bf16.msra.mxu0 0
        %679 = vmatprep.subr.bf16.mxu0 0
        %680 = vmatpush1.bf16.msra.mxu0 0
        %681 = vmatprep.subr.bf16.mxu0 0
        %682 = vmatpush1.bf16.msra.mxu0 0
        %683 = vmatprep.subr.bf16.mxu0 0
        %684 = vmatpush1.bf16.msra.mxu0 0
        %685 = vmatprep.subr.bf16.mxu0 0
        %686 = vmatpush1.bf16.msra.mxu0 0
        %687 = vmatprep.subr.bf16.mxu0 0
        %688 = vmatpush1.bf16.msra.mxu0 0
        %689 = vmatprep.subr.bf16.mxu0 0
        %690 = vmatpush1.bf16.msra.mxu0 0
        %691 = vmatprep.subr.bf16.mxu0 0
        %692 = vmatpush1.bf16.msra.mxu0 0
        %693 = vmatprep.subr.bf16.mxu0 0
        %694 = vmatpush1.bf16.msra.mxu0 0
        %695 = vmatprep.mubr.bf16.mxu0 0
        %696 = vmatmul.mubr.bf16.gmra.mrb[0].mxu0 %v661
        %v697 = vpop.f32.mrb[0].mxu0
        %v698 = vadd.f32 0.0, %v697
        %v699 = vpop.f32.mrb[0].mxu0
        %v700 = vadd.f32 0.0, %v699
        %v701 = vpop.f32.mrb[0].mxu0
        %v702 = vadd.f32 0.0, %v701
        %v703 = vpop.f32.mrb[0].mxu0
        %v704 = vadd.f32 0.0, %v703
        %705 = vdwg.mxu0
        %v706 = vmax.f32 %v644, %v698
        %v707 = vmax.f32 %v646, %v700
        %v708 = vmax.f32 %v648, %v702
        %v709 = vmax.f32 %v650, %v704
        %v710 = vpack.c.bf16 %v708, %v706
        %v711 = vpack.c.bf16 %v709, %v707
        %v712 = vld [vmem:[%s7] sm:$0xf]
        %v713 = vld [vmem:[%s7 + $0x4] sm:$0xf]
        %v714 = vld [vmem:[%s7 + $0x8] sm:$0xf]
        %v715 = vld [vmem:[%s7 + $0xc] sm:$0xf]
        %v716 = vld [vmem:[%s7 + $0x10] sm:$0xf]
        %v717 = vld [vmem:[%s7 + $0x14] sm:$0xf]
        %v718 = vld [vmem:[%s7 + $0x18] sm:$0xf]
        %v719 = vld [vmem:[%s7 + $0x1c] sm:$0xf]
        %v720 = vld [vmem:[%s7 + $0x20] sm:$0xf]
        %v721 = vld [vmem:[%s7 + $0x24] sm:$0xf]
        %v722 = vld [vmem:[%s7 + $0x28] sm:$0xf]
        %v723 = vld [vmem:[%s7 + $0x2c] sm:$0xf]
        %v724 = vld [vmem:[%s7 + $0x30] sm:$0xf]
        %v725 = vld [vmem:[%s7 + $0x34] sm:$0xf]
        %v726 = vld [vmem:[%s7 + $0x38] sm:$0xf]
        %v727 = vld [vmem:[%s7 + $0x3c] sm:$0xf]
        %v728 = vld [vmem:[%s7 + $0x40] sm:$0xf]
        %v729 = vld [vmem:[%s7 + $0x44] sm:$0xf]
        %v730 = vld [vmem:[%s7 + $0x48] sm:$0xf]
        %v731 = vld [vmem:[%s7 + $0x4c] sm:$0xf]
        %v732 = vld [vmem:[%s7 + $0x50] sm:$0xf]
        %v754 = vunpack.c.l.b16 %v712
        %v755 = vunpack.c.l.b16 %v713
        %v756 = vunpack.c.l.b16 %v714
        %v757 = vunpack.c.l.b16 %v715
        %v758 = vunpack.c.l.b16 %v716
        %v759 = vunpack.c.l.b16 %v717
        %v760 = vunpack.c.l.b16 %v718
        %v761 = vunpack.c.l.b16 %v719
        %v762 = vunpack.c.l.b16 %v720
        %v763 = vunpack.c.l.b16 %v721
        %v764 = vunpack.c.l.b16 %v722
        %v765 = vunpack.c.l.b16 %v723
        %v766 = vunpack.c.l.b16 %v724
        %v767 = vunpack.c.l.b16 %v725
        %v768 = vunpack.c.l.b16 %v726
        %v769 = vunpack.c.l.b16 %v727
        %v770 = vunpack.c.l.b16 %v728
        %v771 = vunpack.c.l.b16 %v729
        %v772 = vunpack.c.l.b16 %v730
        %v773 = vunpack.c.l.b16 %v731
        %v774 = vunpack.c.l.b16 %v732
        %v775 = vpack.c.b16 %v755, %v754
        %v776 = vpack.c.b16 %v757, %v756
        %v777 = vpack.c.b16 %v759, %v758
        %v778 = vpack.c.b16 %v761, %v760
        %v779 = vpack.c.b16 %v763, %v762
        %v780 = vpack.c.b16 %v765, %v764
        %v781 = vpack.c.b16 %v767, %v766
        %v782 = vpack.c.b16 %v769, %v768
        %v783 = vpack.c.b16 %v771, %v770
        %v784 = vpack.c.b16 %v773, %v772
        %v785 = vpack.c.b16 %v774, %v774
        %vm796 = vcmask 326656
        %v798 = vsel %vm796, %v711, 0
        %vm800 = vcmask 1043456
        %v802 = vsel %vm800, %v785, 0
        %804 = vmatprep.subr.bf16.mxu0 0
        %805 = vmatpush1.bf16.msra.mxu0 %v775
        %806 = vmatprep.subr.bf16.mxu0 0
        %807 = vmatpush1.bf16.msra.mxu0 %v776
        %808 = vmatprep.subr.bf16.mxu0 0
        %809 = vmatpush1.bf16.msra.mxu0 %v777
        %810 = vmatprep.subr.bf16.mxu0 0
        %811 = vmatpush1.bf16.msra.mxu0 %v778
        %812 = vmatprep.subr.bf16.mxu0 0
        %813 = vmatpush1.bf16.msra.mxu0 %v779
        %814 = vmatprep.subr.bf16.mxu0 0
        %815 = vmatpush1.bf16.msra.mxu0 %v780
        %816 = vmatprep.subr.bf16.mxu0 0
        %817 = vmatpush1.bf16.msra.mxu0 %v781
        %818 = vmatprep.subr.bf16.mxu0 0
        %819 = vmatpush1.bf16.msra.mxu0 %v782
        %820 = vmatprep.subr.bf16.mxu0 0
        %821 = vmatpush1.bf16.msra.mxu0 %v783
        %822 = vmatprep.subr.bf16.mxu0 0
        %823 = vmatpush1.bf16.msra.mxu0 %v784
        %824 = vmatprep.subr.bf16.mxu0 0
        %825 = vmatpush1.bf16.msra.mxu0 %v802
        %826 = vmatprep.subr.bf16.mxu0 0
        %827 = vmatpush1.bf16.msra.mxu0 0
        %828 = vmatprep.subr.bf16.mxu0 0
        %829 = vmatpush1.bf16.msra.mxu0 0
        %830 = vmatprep.subr.bf16.mxu0 0
        %831 = vmatpush1.bf16.msra.mxu0 0
        %832 = vmatprep.subr.bf16.mxu0 0
        %833 = vmatpush1.bf16.msra.mxu0 0
        %834 = vmatprep.subr.bf16.mxu0 0
        %835 = vmatpush1.bf16.msra.mxu0 0
        %836 = vmatprep.mubr.bf16.mxu0 %v798
        %837 = vmatmul.mubr.bf16.gmra.mrb[0].mxu0 %v710
        %v838 = vpop.f32.mrb[0].mxu0
        %v839 = vadd.f32 0.0, %v838
        %v840 = vpop.f32.mrb[0].mxu0
        %v841 = vpop.f32.mrb[0].mxu0
        %v842 = vadd.f32 0.0, %v841
        %v843 = vpop.f32.mrb[0].mxu0
        %844 = vdwg.mxu0
        %s845 = scalar_lea.vmem %s7, 84
        %v846 = vld [vmem:[%s845] sm:$0xf]
        %v847 = vld [vmem:[%s845 + $0x4] sm:$0xf]
        %v848 = vld [vmem:[%s845 + $0x8] sm:$0xf]
        %v849 = vld [vmem:[%s845 + $0xc] sm:$0xf]
        %v850 = vld [vmem:[%s845 + $0x10] sm:$0xf]
        %v851 = vld [vmem:[%s845 + $0x14] sm:$0xf]
        %v852 = vld [vmem:[%s845 + $0x18] sm:$0xf]
        %v853 = vld [vmem:[%s845 + $0x1c] sm:$0xf]
        %v854 = vld [vmem:[%s845 + $0x20] sm:$0xf]
        %v855 = vld [vmem:[%s845 + $0x24] sm:$0xf]
        %v856 = vld [vmem:[%s845 + $0x28] sm:$0xf]
        %v857 = vld [vmem:[%s845 + $0x2c] sm:$0xf]
        %v858 = vld [vmem:[%s845 + $0x30] sm:$0xf]
        %v859 = vld [vmem:[%s845 + $0x34] sm:$0xf]
        %v860 = vld [vmem:[%s845 + $0x38] sm:$0xf]
        %v861 = vld [vmem:[%s845 + $0x3c] sm:$0xf]
        %v862 = vld [vmem:[%s845 + $0x40] sm:$0xf]
        %v863 = vld [vmem:[%s845 + $0x44] sm:$0xf]
        %v864 = vld [vmem:[%s845 + $0x48] sm:$0xf]
        %v865 = vld [vmem:[%s845 + $0x4c] sm:$0xf]
        %v866 = vld [vmem:[%s845 + $0x50] sm:$0xf]
        %v888 = vunpack.c.l.b16 %v846
        %v889 = vunpack.c.l.b16 %v847
        %v890 = vunpack.c.l.b16 %v848
        %v891 = vunpack.c.l.b16 %v849
        %v892 = vunpack.c.l.b16 %v850
        %v893 = vunpack.c.l.b16 %v851
        %v894 = vunpack.c.l.b16 %v852
        %v895 = vunpack.c.l.b16 %v853
        %v896 = vunpack.c.l.b16 %v854
        %v897 = vunpack.c.l.b16 %v855
        %v898 = vunpack.c.l.b16 %v856
        %v899 = vunpack.c.l.b16 %v857
        %v900 = vunpack.c.l.b16 %v858
        %v901 = vunpack.c.l.b16 %v859
        %v902 = vunpack.c.l.b16 %v860
        %v903 = vunpack.c.l.b16 %v861
        %v904 = vunpack.c.l.b16 %v862
        %v905 = vunpack.c.l.b16 %v863
        %v906 = vunpack.c.l.b16 %v864
        %v907 = vunpack.c.l.b16 %v865
        %v908 = vunpack.c.l.b16 %v866
        %v909 = vpack.c.b16 %v889, %v888
        %v910 = vpack.c.b16 %v891, %v890
        %v911 = vpack.c.b16 %v893, %v892
        %v912 = vpack.c.b16 %v895, %v894
        %v913 = vpack.c.b16 %v897, %v896
        %v914 = vpack.c.b16 %v899, %v898
        %v915 = vpack.c.b16 %v901, %v900
        %v916 = vpack.c.b16 %v903, %v902
        %v917 = vpack.c.b16 %v905, %v904
        %v918 = vpack.c.b16 %v907, %v906
        %v919 = vpack.c.b16 %v908, %v908
        %v931 = vsel %vm800, %v919, 0
        %933 = vmatprep.subr.bf16.mxu0 0
        %934 = vmatpush1.bf16.msra.mxu0 %v909
        %935 = vmatprep.subr.bf16.mxu0 0
        %936 = vmatpush1.bf16.msra.mxu0 %v910
        %937 = vmatprep.subr.bf16.mxu0 0
        %938 = vmatpush1.bf16.msra.mxu0 %v911
        %939 = vmatprep.subr.bf16.mxu0 0
        %940 = vmatpush1.bf16.msra.mxu0 %v912
        %941 = vmatprep.subr.bf16.mxu0 0
        %942 = vmatpush1.bf16.msra.mxu0 %v913
        %943 = vmatprep.subr.bf16.mxu0 0
        %944 = vmatpush1.bf16.msra.mxu0 %v914
        %945 = vmatprep.subr.bf16.mxu0 0
        %946 = vmatpush1.bf16.msra.mxu0 %v915
        %947 = vmatprep.subr.bf16.mxu0 0
        %948 = vmatpush1.bf16.msra.mxu0 %v916
        %949 = vmatprep.subr.bf16.mxu0 0
        %950 = vmatpush1.bf16.msra.mxu0 %v917
        %951 = vmatprep.subr.bf16.mxu0 0
        %952 = vmatpush1.bf16.msra.mxu0 %v918
        %953 = vmatprep.subr.bf16.mxu0 0
        %954 = vmatpush1.bf16.msra.mxu0 %v931
        %955 = vmatprep.subr.bf16.mxu0 0
        %956 = vmatpush1.bf16.msra.mxu0 0
        %957 = vmatprep.subr.bf16.mxu0 0
        %958 = vmatpush1.bf16.msra.mxu0 0
        %959 = vmatprep.subr.bf16.mxu0 0
        %960 = vmatpush1.bf16.msra.mxu0 0
        %961 = vmatprep.subr.bf16.mxu0 0
        %962 = vmatpush1.bf16.msra.mxu0 0
        %963 = vmatprep.subr.bf16.mxu0 0
        %964 = vmatpush1.bf16.msra.mxu0 0
        %965 = vmatprep.mubr.bf16.mxu0 %v798
        %966 = vmatmul.mubr.bf16.gmra.mrb[0].mxu0 %v710
        %v967 = vpop.f32.mrb[0].mxu0
        %v968 = vadd.f32 0.0, %v967
        %v969 = vpop.f32.mrb[0].mxu0
        %v970 = vpop.f32.mrb[0].mxu0
        %v971 = vadd.f32 0.0, %v970
        %v972 = vpop.f32.mrb[0].mxu0
        %973 = vdwg.mxu0
        %v974 = vmax.f32 %v839, %v968
        %v975 = vmax.f32 %v842, %v971
        %v976 = vld [vmem:[%s10] sm:$0x1]
        %v977 = vlaneseq
        %v978 = vshrl.u32 %v977, 7
        %v979 = vsub.s32 0, %v978
        %v980 = vrot.slane %v976, %v979
        %v981 = vadd.f32 %v974, %v980
        %v982 = vadd.f32 %v975, %v980
        %v983 = vmax.f32 %v981, 0.0
        %v984 = vmax.f32 %v982, 0.0
        %v985 = vpack.c.bf16 %v984, %v983
        %v986 = vld [vmem:[%s2] sm:$0xf]
        %v987 = vld [vmem:[%s2 + $0x4] sm:$0xf]
        %v988 = vld [vmem:[%s2 + $0x8] sm:$0xf]
        %v989 = vld [vmem:[%s2 + $0xc] sm:$0xf]
        %v990 = vld [vmem:[%s2 + $0x10] sm:$0xf]
        %v991 = vld [vmem:[%s2 + $0x14] sm:$0xf]
        %v992 = vld [vmem:[%s2 + $0x18] sm:$0xf]
        %v993 = vld [vmem:[%s2 + $0x1c] sm:$0xf]
        %v994 = vld [vmem:[%s2 + $0x20] sm:$0xf]
        %v995 = vld [vmem:[%s2 + $0x24] sm:$0xf]
        %v996 = vld [vmem:[%s2 + $0x28] sm:$0x3]
        %s997 = scalar_lea.vmem %s2, 44
        %v998 = vld [vmem:[%s997] sm:$0xf]
        %v999 = vld [vmem:[%s997 + $0x4] sm:$0xf]
        %v1000 = vld [vmem:[%s997 + $0x8] sm:$0xf]
        %v1001 = vld [vmem:[%s997 + $0xc] sm:$0xf]
        %v1002 = vld [vmem:[%s997 + $0x10] sm:$0xf]
        %v1003 = vld [vmem:[%s997 + $0x14] sm:$0xf]
        %v1004 = vld [vmem:[%s997 + $0x18] sm:$0xf]
        %v1005 = vld [vmem:[%s997 + $0x1c] sm:$0xf]
        %v1006 = vld [vmem:[%s997 + $0x20] sm:$0xf]
        %v1007 = vld [vmem:[%s997 + $0x24] sm:$0xf]
        %v1008 = vld [vmem:[%s997 + $0x28] sm:$0x3]
        %v1010 = vshrl.u32 %v985, 16
        %v1012 = vshll.u32 %v985, 16
        %v1014 = vrot.slane %v1012, 1
        %v1015 = vor.u32 %v1010, %v1014
        %v1027 = vunpack.c.l.b16 %v998
        %v1028 = vunpack.c.l.b16 %v999
        %v1029 = vunpack.c.l.b16 %v1000
        %v1030 = vunpack.c.l.b16 %v1001
        %v1031 = vunpack.c.l.b16 %v1002
        %v1032 = vunpack.c.l.b16 %v1003
        %v1033 = vunpack.c.l.b16 %v1004
        %v1034 = vunpack.c.l.b16 %v1005
        %v1035 = vunpack.c.l.b16 %v1006
        %v1036 = vunpack.c.l.b16 %v1007
        %v1037 = vunpack.c.l.b16 %v1008
        %v1038 = vpack.c.b16 %v1028, %v1027
        %v1039 = vpack.c.b16 %v1030, %v1029
        %v1040 = vpack.c.b16 %v1032, %v1031
        %v1041 = vpack.c.b16 %v1034, %v1033
        %v1042 = vpack.c.b16 %v1036, %v1035
        %v1043 = vpack.c.b16 %v1037, %v1037
        %vm1049 = vcmask 687104
        %v1051 = vsel %vm1049, %v1015, 0
        %vm1053 = vcmask 1041408
        %v1055 = vsel %vm1053, %v1043, 0
        %1057 = vmatprep.subr.bf16.mxu0 0
        %1058 = vmatpush1.bf16.msra.mxu0 %v1038
        %1059 = vmatprep.subr.bf16.mxu0 0
        %1060 = vmatpush1.bf16.msra.mxu0 %v1039
        %1061 = vmatprep.subr.bf16.mxu0 0
        %1062 = vmatpush1.bf16.msra.mxu0 %v1040
        %1063 = vmatprep.subr.bf16.mxu0 0
        %1064 = vmatpush1.bf16.msra.mxu0 %v1041
        %1065 = vmatprep.subr.bf16.mxu0 0
        %1066 = vmatpush1.bf16.msra.mxu0 %v1042
        %1067 = vmatprep.subr.bf16.mxu0 0
        %1068 = vmatpush1.bf16.msra.mxu0 %v1055
        %1069 = vmatprep.subr.bf16.mxu0 0
        %1070 = vmatpush1.bf16.msra.mxu0 0
        %1071 = vmatprep.subr.bf16.mxu0 0
        %1072 = vmatpush1.bf16.msra.mxu0 0
        %1073 = vmatprep.subr.bf16.mxu0 0
        %1074 = vmatpush1.bf16.msra.mxu0 0
        %1075 = vmatprep.subr.bf16.mxu0 0
        %1076 = vmatpush1.bf16.msra.mxu0 0
        %1077 = vmatprep.subr.bf16.mxu0 0
        %1078 = vmatpush1.bf16.msra.mxu0 0
        %1079 = vmatprep.subr.bf16.mxu0 0
        %1080 = vmatpush1.bf16.msra.mxu0 0
        %1081 = vmatprep.subr.bf16.mxu0 0
        %1082 = vmatpush1.bf16.msra.mxu0 0
        %1083 = vmatprep.subr.bf16.mxu0 0
        %1084 = vmatpush1.bf16.msra.mxu0 0
        %1085 = vmatprep.subr.bf16.mxu0 0
        %1086 = vmatpush1.bf16.msra.mxu0 0
        %1087 = vmatprep.subr.bf16.mxu0 0
        %1088 = vmatpush1.bf16.msra.mxu0 0
        %1089 = vmatprep.mubr.bf16.mxu0 0
        %1090 = vmatmul.mubr.bf16.gmra.mrb[0].mxu0 %v1051
        %v1091 = vpop.f32.mrb[0].mxu0
        %v1092 = vadd.f32 0.0, %v1091
        %v1093 = vpop.f32.mrb[0].mxu0
        %v1094 = vpop.f32.mrb[0].mxu0
        %v1095 = vadd.f32 0.0, %v1094
        %v1096 = vpop.f32.mrb[0].mxu0
        %1097 = vdwg.mxu0
        %v1109 = vunpack.c.l.b16 %v986
        %v1110 = vunpack.c.l.b16 %v987
        %v1111 = vunpack.c.l.b16 %v988
        %v1112 = vunpack.c.l.b16 %v989
        %v1113 = vunpack.c.l.b16 %v990
        %v1114 = vunpack.c.l.b16 %v991
        %v1115 = vunpack.c.l.b16 %v992
        %v1116 = vunpack.c.l.b16 %v993
        %v1117 = vunpack.c.l.b16 %v994
        %v1118 = vunpack.c.l.b16 %v995
        %v1119 = vunpack.c.l.b16 %v996
        %v1120 = vpack.c.b16 %v1110, %v1109
        %v1121 = vpack.c.b16 %v1112, %v1111
        %v1122 = vpack.c.b16 %v1114, %v1113
        %v1123 = vpack.c.b16 %v1116, %v1115
        %v1124 = vpack.c.b16 %v1118, %v1117
        %v1125 = vpack.c.b16 %v1119, %v1119
        %v1131 = vsel %vm1049, %v985, 0
        %v1134 = vsel %vm1053, %v1125, 0
        %1136 = vmatprep.subr.bf16.mxu0 0
        %1137 = vmatpush1.bf16.msra.mxu0 %v1120
        %1138 = vmatprep.subr.bf16.mxu0 0
        %1139 = vmatpush1.bf16.msra.mxu0 %v1121
        %1140 = vmatprep.subr.bf16.mxu0 0
        %1141 = vmatpush1.bf16.msra.mxu0 %v1122
        %1142 = vmatprep.subr.bf16.mxu0 0
        %1143 = vmatpush1.bf16.msra.mxu0 %v1123
        %1144 = vmatprep.subr.bf16.mxu0 0
        %1145 = vmatpush1.bf16.msra.mxu0 %v1124
        %1146 = vmatprep.subr.bf16.mxu0 0
        %1147 = vmatpush1.bf16.msra.mxu0 %v1134
        %1148 = vmatprep.subr.bf16.mxu0 0
        %1149 = vmatpush1.bf16.msra.mxu0 0
        %1150 = vmatprep.subr.bf16.mxu0 0
        %1151 = vmatpush1.bf16.msra.mxu0 0
        %1152 = vmatprep.subr.bf16.mxu0 0
        %1153 = vmatpush1.bf16.msra.mxu0 0
        %1154 = vmatprep.subr.bf16.mxu0 0
        %1155 = vmatpush1.bf16.msra.mxu0 0
        %1156 = vmatprep.subr.bf16.mxu0 0
        %1157 = vmatpush1.bf16.msra.mxu0 0
        %1158 = vmatprep.subr.bf16.mxu0 0
        %1159 = vmatpush1.bf16.msra.mxu0 0
        %1160 = vmatprep.subr.bf16.mxu0 0
        %1161 = vmatpush1.bf16.msra.mxu0 0
        %1162 = vmatprep.subr.bf16.mxu0 0
        %1163 = vmatpush1.bf16.msra.mxu0 0
        %1164 = vmatprep.subr.bf16.mxu0 0
        %1165 = vmatpush1.bf16.msra.mxu0 0
        %1166 = vmatprep.subr.bf16.mxu0 0
        %1167 = vmatpush1.bf16.msra.mxu0 0
        %1168 = vmatprep.mubr.bf16.mxu0 0
        %1169 = vmatmul.mubr.bf16.gmra.mrb[0].mxu0 %v1131
        %v1170 = vpop.f32.mrb[0].mxu0
        %v1171 = vadd.f32 %v1092, %v1170
        %v1172 = vpop.f32.mrb[0].mxu0
        %v1173 = vpop.f32.mrb[0].mxu0
        %v1174 = vadd.f32 %v1095, %v1173
        %v1175 = vpop.f32.mrb[0].mxu0
        %1176 = vdwg.mxu0
        %s1177 = scalar_lea.vmem %s2, 88
        %v1178 = vld [vmem:[%s1177] sm:$0xf]
        %v1179 = vld [vmem:[%s1177 + $0x4] sm:$0xf]
        %v1180 = vld [vmem:[%s1177 + $0x8] sm:$0xf]
        %v1181 = vld [vmem:[%s1177 + $0xc] sm:$0xf]
        %v1182 = vld [vmem:[%s1177 + $0x10] sm:$0xf]
        %v1183 = vld [vmem:[%s1177 + $0x14] sm:$0xf]
        %v1184 = vld [vmem:[%s1177 + $0x18] sm:$0xf]
        %v1185 = vld [vmem:[%s1177 + $0x1c] sm:$0xf]
        %v1186 = vld [vmem:[%s1177 + $0x20] sm:$0xf]
        %v1187 = vld [vmem:[%s1177 + $0x24] sm:$0xf]
        %v1188 = vld [vmem:[%s1177 + $0x28] sm:$0x3]
        %v1190 = vrot.slane %v985, 1
        %v1202 = vunpack.c.l.b16 %v1178
        %v1203 = vunpack.c.l.b16 %v1179
        %v1204 = vunpack.c.l.b16 %v1180
        %v1205 = vunpack.c.l.b16 %v1181
        %v1206 = vunpack.c.l.b16 %v1182
        %v1207 = vunpack.c.l.b16 %v1183
        %v1208 = vunpack.c.l.b16 %v1184
        %v1209 = vunpack.c.l.b16 %v1185
        %v1210 = vunpack.c.l.b16 %v1186
        %v1211 = vunpack.c.l.b16 %v1187
        %v1212 = vunpack.c.l.b16 %v1188
        %v1213 = vpack.c.b16 %v1203, %v1202
        %v1214 = vpack.c.b16 %v1205, %v1204
        %v1215 = vpack.c.b16 %v1207, %v1206
        %v1216 = vpack.c.b16 %v1209, %v1208
        %v1217 = vpack.c.b16 %v1211, %v1210
        %v1218 = vpack.c.b16 %v1212, %v1212
        %v1225 = vsel %vm1049, %v1190, 0
        %v1228 = vsel %vm1053, %v1218, 0
        %1230 = vmatprep.subr.bf16.mxu0 0
        %1231 = vmatpush1.bf16.msra.mxu0 %v1213
        %1232 = vmatprep.subr.bf16.mxu0 0
        %1233 = vmatpush1.bf16.msra.mxu0 %v1214
        %1234 = vmatprep.subr.bf16.mxu0 0
        %1235 = vmatpush1.bf16.msra.mxu0 %v1215
        %1236 = vmatprep.subr.bf16.mxu0 0
        %1237 = vmatpush1.bf16.msra.mxu0 %v1216
        %1238 = vmatprep.subr.bf16.mxu0 0
        %1239 = vmatpush1.bf16.msra.mxu0 %v1217
        %1240 = vmatprep.subr.bf16.mxu0 0
        %1241 = vmatpush1.bf16.msra.mxu0 %v1228
        %1242 = vmatprep.subr.bf16.mxu0 0
        %1243 = vmatpush1.bf16.msra.mxu0 0
        %1244 = vmatprep.subr.bf16.mxu0 0
        %1245 = vmatpush1.bf16.msra.mxu0 0
        %1246 = vmatprep.subr.bf16.mxu0 0
        %1247 = vmatpush1.bf16.msra.mxu0 0
        %1248 = vmatprep.subr.bf16.mxu0 0
        %1249 = vmatpush1.bf16.msra.mxu0 0
        %1250 = vmatprep.subr.bf16.mxu0 0
        %1251 = vmatpush1.bf16.msra.mxu0 0
        %1252 = vmatprep.subr.bf16.mxu0 0
        %1253 = vmatpush1.bf16.msra.mxu0 0
        %1254 = vmatprep.subr.bf16.mxu0 0
        %1255 = vmatpush1.bf16.msra.mxu0 0
        %1256 = vmatprep.subr.bf16.mxu0 0
        %1257 = vmatpush1.bf16.msra.mxu0 0
        %1258 = vmatprep.subr.bf16.mxu0 0
        %1259 = vmatpush1.bf16.msra.mxu0 0
        %1260 = vmatprep.subr.bf16.mxu0 0
        %1261 = vmatpush1.bf16.msra.mxu0 0
        %1262 = vmatprep.mubr.bf16.mxu0 0
        %1263 = vmatmul.mubr.bf16.gmra.mrb[0].mxu0 %v1225
        %v1264 = vpop.f32.mrb[0].mxu0
        %v1265 = vadd.f32 0.0, %v1264
        %v1266 = vpop.f32.mrb[0].mxu0
        %v1267 = vpop.f32.mrb[0].mxu0
        %v1268 = vadd.f32 0.0, %v1267
        %v1269 = vpop.f32.mrb[0].mxu0
        %1270 = vdwg.mxu0
        %v1271 = vadd.f32 %v1171, %v1265
        %v1272 = vadd.f32 %v1174, %v1268
        %s1273 = scalar_lea.vmem %s2, 132
        %v1274 = vld [vmem:[%s1273] sm:$0xf]
        %v1275 = vld [vmem:[%s1273 + $0x4] sm:$0xf]
        %v1276 = vld [vmem:[%s1273 + $0x8] sm:$0xf]
        %v1277 = vld [vmem:[%s1273 + $0xc] sm:$0xf]
        %v1278 = vld [vmem:[%s1273 + $0x10] sm:$0xf]
        %v1279 = vld [vmem:[%s1273 + $0x14] sm:$0xf]
        %v1280 = vld [vmem:[%s1273 + $0x18] sm:$0xf]
        %v1281 = vld [vmem:[%s1273 + $0x1c] sm:$0xf]
        %v1282 = vld [vmem:[%s1273 + $0x20] sm:$0xf]
        %v1283 = vld [vmem:[%s1273 + $0x24] sm:$0xf]
        %v1284 = vld [vmem:[%s1273 + $0x28] sm:$0x3]
        %v1285 = vrot.slane %v1010, 1
        %v1286 = vrot.slane %v1012, 2
        %v1287 = vor.u32 %v1285, %v1286
        %v1299 = vunpack.c.l.b16 %v1274
        %v1300 = vunpack.c.l.b16 %v1275
        %v1301 = vunpack.c.l.b16 %v1276
        %v1302 = vunpack.c.l.b16 %v1277
        %v1303 = vunpack.c.l.b16 %v1278
        %v1304 = vunpack.c.l.b16 %v1279
        %v1305 = vunpack.c.l.b16 %v1280
        %v1306 = vunpack.c.l.b16 %v1281
        %v1307 = vunpack.c.l.b16 %v1282
        %v1308 = vunpack.c.l.b16 %v1283
        %v1309 = vunpack.c.l.b16 %v1284
        %v1310 = vpack.c.b16 %v1300, %v1299
        %v1311 = vpack.c.b16 %v1302, %v1301
        %v1312 = vpack.c.b16 %v1304, %v1303
        %v1313 = vpack.c.b16 %v1306, %v1305
        %v1314 = vpack.c.b16 %v1308, %v1307
        %v1315 = vpack.c.b16 %v1309, %v1309
        %v1322 = vsel %vm1049, %v1287, 0
        %v1325 = vsel %vm1053, %v1315, 0
        %1327 = vmatprep.subr.bf16.mxu0 0
        %1328 = vmatpush1.bf16.msra.mxu0 %v1310
        %1329 = vmatprep.subr.bf16.mxu0 0
        %1330 = vmatpush1.bf16.msra.mxu0 %v1311
        %1331 = vmatprep.subr.bf16.mxu0 0
        %1332 = vmatpush1.bf16.msra.mxu0 %v1312
        %1333 = vmatprep.subr.bf16.mxu0 0
        %1334 = vmatpush1.bf16.msra.mxu0 %v1313
        %1335 = vmatprep.subr.bf16.mxu0 0
        %1336 = vmatpush1.bf16.msra.mxu0 %v1314
        %1337 = vmatprep.subr.bf16.mxu0 0
        %1338 = vmatpush1.bf16.msra.mxu0 %v1325
        %1339 = vmatprep.subr.bf16.mxu0 0
        %1340 = vmatpush1.bf16.msra.mxu0 0
        %1341 = vmatprep.subr.bf16.mxu0 0
        %1342 = vmatpush1.bf16.msra.mxu0 0
        %1343 = vmatprep.subr.bf16.mxu0 0
        %1344 = vmatpush1.bf16.msra.mxu0 0
        %1345 = vmatprep.subr.bf16.mxu0 0
        %1346 = vmatpush1.bf16.msra.mxu0 0
        %1347 = vmatprep.subr.bf16.mxu0 0
        %1348 = vmatpush1.bf16.msra.mxu0 0
        %1349 = vmatprep.subr.bf16.mxu0 0
        %1350 = vmatpush1.bf16.msra.mxu0 0
        %1351 = vmatprep.subr.bf16.mxu0 0
        %1352 = vmatpush1.bf16.msra.mxu0 0
        %1353 = vmatprep.subr.bf16.mxu0 0
        %1354 = vmatpush1.bf16.msra.mxu0 0
        %1355 = vmatprep.subr.bf16.mxu0 0
        %1356 = vmatpush1.bf16.msra.mxu0 0
        %1357 = vmatprep.subr.bf16.mxu0 0
        %1358 = vmatpush1.bf16.msra.mxu0 0
        %1359 = vmatprep.mubr.bf16.mxu0 0
        %1360 = vmatmul.mubr.bf16.gmra.mrb[0].mxu0 %v1322
        %v1361 = vpop.f32.mrb[0].mxu0
        %v1362 = vadd.f32 0.0, %v1361
        %v1363 = vpop.f32.mrb[0].mxu0
        %v1364 = vpop.f32.mrb[0].mxu0
        %v1365 = vadd.f32 0.0, %v1364
        %v1366 = vpop.f32.mrb[0].mxu0
        %1367 = vdwg.mxu0
        %v1368 = vadd.f32 %v1271, %v1362
        %v1369 = vadd.f32 %v1272, %v1365
        %s1370 = scalar_lea.vmem %s2, 176
        %v1371 = vld [vmem:[%s1370] sm:$0xf]
        %v1372 = vld [vmem:[%s1370 + $0x4] sm:$0xf]
        %v1373 = vld [vmem:[%s1370 + $0x8] sm:$0xf]
        %v1374 = vld [vmem:[%s1370 + $0xc] sm:$0xf]
        %v1375 = vld [vmem:[%s1370 + $0x10] sm:$0xf]
        %v1376 = vld [vmem:[%s1370 + $0x14] sm:$0xf]
        %v1377 = vld [vmem:[%s1370 + $0x18] sm:$0xf]
        %v1378 = vld [vmem:[%s1370 + $0x1c] sm:$0xf]
        %v1379 = vld [vmem:[%s1370 + $0x20] sm:$0xf]
        %v1380 = vld [vmem:[%s1370 + $0x24] sm:$0xf]
        %v1381 = vld [vmem:[%s1370 + $0x28] sm:$0x3]
        %v1382 = vrot.slane %v985, 2
        %v1394 = vunpack.c.l.b16 %v1371
        %v1395 = vunpack.c.l.b16 %v1372
        %v1396 = vunpack.c.l.b16 %v1373
        %v1397 = vunpack.c.l.b16 %v1374
        %v1398 = vunpack.c.l.b16 %v1375
        %v1399 = vunpack.c.l.b16 %v1376
        %v1400 = vunpack.c.l.b16 %v1377
        %v1401 = vunpack.c.l.b16 %v1378
        %v1402 = vunpack.c.l.b16 %v1379
        %v1403 = vunpack.c.l.b16 %v1380
        %v1404 = vunpack.c.l.b16 %v1381
        %v1405 = vpack.c.b16 %v1395, %v1394
        %v1406 = vpack.c.b16 %v1397, %v1396
        %v1407 = vpack.c.b16 %v1399, %v1398
        %v1408 = vpack.c.b16 %v1401, %v1400
        %v1409 = vpack.c.b16 %v1403, %v1402
        %v1410 = vpack.c.b16 %v1404, %v1404
        %v1417 = vsel %vm1049, %v1382, 0
        %v1420 = vsel %vm1053, %v1410, 0
        %1422 = vmatprep.subr.bf16.mxu0 0
        %1423 = vmatpush1.bf16.msra.mxu0 %v1405
        %1424 = vmatprep.subr.bf16.mxu0 0
        %1425 = vmatpush1.bf16.msra.mxu0 %v1406
        %1426 = vmatprep.subr.bf16.mxu0 0
        %1427 = vmatpush1.bf16.msra.mxu0 %v1407
        %1428 = vmatprep.subr.bf16.mxu0 0
        %1429 = vmatpush1.bf16.msra.mxu0 %v1408
        %1430 = vmatprep.subr.bf16.mxu0 0
        %1431 = vmatpush1.bf16.msra.mxu0 %v1409
        %1432 = vmatprep.subr.bf16.mxu0 0
        %1433 = vmatpush1.bf16.msra.mxu0 %v1420
        %1434 = vmatprep.subr.bf16.mxu0 0
        %1435 = vmatpush1.bf16.msra.mxu0 0
        %1436 = vmatprep.subr.bf16.mxu0 0
        %1437 = vmatpush1.bf16.msra.mxu0 0
        %1438 = vmatprep.subr.bf16.mxu0 0
        %1439 = vmatpush1.bf16.msra.mxu0 0
        %1440 = vmatprep.subr.bf16.mxu0 0
        %1441 = vmatpush1.bf16.msra.mxu0 0
        %1442 = vmatprep.subr.bf16.mxu0 0
        %1443 = vmatpush1.bf16.msra.mxu0 0
        %1444 = vmatprep.subr.bf16.mxu0 0
        %1445 = vmatpush1.bf16.msra.mxu0 0
        %1446 = vmatprep.subr.bf16.mxu0 0
        %1447 = vmatpush1.bf16.msra.mxu0 0
        %1448 = vmatprep.subr.bf16.mxu0 0
        %1449 = vmatpush1.bf16.msra.mxu0 0
        %1450 = vmatprep.subr.bf16.mxu0 0
        %1451 = vmatpush1.bf16.msra.mxu0 0
        %1452 = vmatprep.subr.bf16.mxu0 0
        %1453 = vmatpush1.bf16.msra.mxu0 0
        %1454 = vmatprep.mubr.bf16.mxu0 0
        %1455 = vmatmul.mubr.bf16.gmra.mrb[0].mxu0 %v1417
        %v1456 = vpop.f32.mrb[0].mxu0
        %v1457 = vadd.f32 0.0, %v1456
        %v1458 = vpop.f32.mrb[0].mxu0
        %v1459 = vpop.f32.mrb[0].mxu0
        %v1460 = vadd.f32 0.0, %v1459
        %v1461 = vpop.f32.mrb[0].mxu0
        %1462 = vdwg.mxu0
        %v1463 = vadd.f32 %v1368, %v1457
        %v1464 = vadd.f32 %v1369, %v1460
        %v1465 = vpack.c.bf16 %v1464, %v1463
        %v1466 = vld [vmem:[%s8] sm:$0x7]
        %vm1467 = vcmask 80896
        %v1469 = vsel %vm1467, %v1466, 0
        %vm1471 = vcmask 1044480
        %v1473 = vsel %vm1471, %v1465, 0
        %1475 = vmatprep.subr.bf16.mxu0 0
        %1476 = vmatpush1.bf16.msra.mxu0 %v1473
        %1477 = vmatprep.subr.bf16.mxu0 0
        %1478 = vmatpush1.bf16.msra.mxu0 0
        %1479 = vmatprep.subr.bf16.mxu0 0
        %1480 = vmatpush1.bf16.msra.mxu0 0
        %1481 = vmatprep.subr.bf16.mxu0 0
        %1482 = vmatpush1.bf16.msra.mxu0 0
        %1483 = vmatprep.subr.bf16.mxu0 0
        %1484 = vmatpush1.bf16.msra.mxu0 0
        %1485 = vmatprep.subr.bf16.mxu0 0
        %1486 = vmatpush1.bf16.msra.mxu0 0
        %1487 = vmatprep.subr.bf16.mxu0 0
        %1488 = vmatpush1.bf16.msra.mxu0 0
        %1489 = vmatprep.subr.bf16.mxu0 0
        %1490 = vmatpush1.bf16.msra.mxu0 0
        %1491 = vmatprep.subr.bf16.mxu0 0
        %1492 = vmatpush1.bf16.msra.mxu0 0
        %1493 = vmatprep.subr.bf16.mxu0 0
        %1494 = vmatpush1.bf16.msra.mxu0 0
        %1495 = vmatprep.subr.bf16.mxu0 0
        %1496 = vmatpush1.bf16.msra.mxu0 0
        %1497 = vmatprep.subr.bf16.mxu0 0
        %1498 = vmatpush1.bf16.msra.mxu0 0
        %1499 = vmatprep.subr.bf16.mxu0 0
        %1500 = vmatpush1.bf16.msra.mxu0 0
        %1501 = vmatprep.subr.bf16.mxu0 0
        %1502 = vmatpush1.bf16.msra.mxu0 0
        %1503 = vmatprep.subr.bf16.mxu0 0
        %1504 = vmatpush1.bf16.msra.mxu0 0
        %1505 = vmatprep.subr.bf16.mxu0 0
        %1506 = vmatpush1.bf16.msra.mxu0 0
        %1507 = vmatprep.mubr.bf16.mxu0 0
        %1508 = vmatmul.mubr.bf16.gmra.mrb[0].mxu0 %v1469
        %v1509 = vpop.f32.mrb[0].mxu0
        %v1510 = vadd.f32 0.0, %v1509
        %v1511 = vpop.f32.mrb[0].mxu0
        %v1512 = vpop.f32.mrb[0].mxu0
        %v1513 = vpop.f32.mrb[0].mxu0
        %1514 = vdwg.mxu0
        %s1515 = scalar_lea.vmem %s8, 4
        %v1516 = vld [vmem:[%s1515] sm:$0x7]
        %v1518 = vsel %vm1467, %v1516, 0
        %1520 = vmatprep.subr.bf16.mxu0 0
        %1521 = vmatpush1.bf16.msra.mxu0 %v1473
        %1522 = vmatprep.subr.bf16.mxu0 0
        %1523 = vmatpush1.bf16.msra.mxu0 0
        %1524 = vmatprep.subr.bf16.mxu0 0
        %1525 = vmatpush1.bf16.msra.mxu0 0
        %1526 = vmatprep.subr.bf16.mxu0 0
        %1527 = vmatpush1.bf16.msra.mxu0 0
        %1528 = vmatprep.subr.bf16.mxu0 0
        %1529 = vmatpush1.bf16.msra.mxu0 0
        %1530 = vmatprep.subr.bf16.mxu0 0
        %1531 = vmatpush1.bf16.msra.mxu0 0
        %1532 = vmatprep.subr.bf16.mxu0 0
        %1533 = vmatpush1.bf16.msra.mxu0 0
        %1534 = vmatprep.subr.bf16.mxu0 0
        %1535 = vmatpush1.bf16.msra.mxu0 0
        %1536 = vmatprep.subr.bf16.mxu0 0
        %1537 = vmatpush1.bf16.msra.mxu0 0
        %1538 = vmatprep.subr.bf16.mxu0 0
        %1539 = vmatpush1.bf16.msra.mxu0 0
        %1540 = vmatprep.subr.bf16.mxu0 0
        %1541 = vmatpush1.bf16.msra.mxu0 0
        %1542 = vmatprep.subr.bf16.mxu0 0
        %1543 = vmatpush1.bf16.msra.mxu0 0
        %1544 = vmatprep.subr.bf16.mxu0 0
        %1545 = vmatpush1.bf16.msra.mxu0 0
        %1546 = vmatprep.subr.bf16.mxu0 0
        %1547 = vmatpush1.bf16.msra.mxu0 0
        %1548 = vmatprep.subr.bf16.mxu0 0
        %1549 = vmatpush1.bf16.msra.mxu0 0
        %1550 = vmatprep.subr.bf16.mxu0 0
        %1551 = vmatpush1.bf16.msra.mxu0 0
        %1552 = vmatprep.mubr.bf16.mxu0 0
        %1553 = vmatmul.mubr.bf16.gmra.mrb[0].mxu0 %v1518
        %v1554 = vpop.f32.mrb[0].mxu0
        %v1555 = vadd.f32 0.0, %v1554
        %v1556 = vpop.f32.mrb[0].mxu0
        %v1557 = vpop.f32.mrb[0].mxu0
        %v1558 = vpop.f32.mrb[0].mxu0
        %1559 = vdwg.mxu0
        %v1560 = vmax.f32 %v1510, %v1555
        %v1561 = vpack.c.bf16 %v1560, %v1560
        %v1562 = vld [vmem:[%s9] sm:$0xf]
        %v1563 = vld [vmem:[%s9 + $0x4] sm:$0xf]
        %v1564 = vld [vmem:[%s9 + $0x8] sm:$0xf]
        %v1565 = vld [vmem:[%s9 + $0xc] sm:$0xf]
        %v1566 = vld [vmem:[%s9 + $0x10] sm:$0xf]
        %v1567 = vld [vmem:[%s9 + $0x14] sm:$0xf]
        %v1568 = vld [vmem:[%s9 + $0x18] sm:$0xf]
        %v1569 = vld [vmem:[%s9 + $0x1c] sm:$0xf]
        %v1570 = vld [vmem:[%s9 + $0x20] sm:$0xf]
        %v1571 = vld [vmem:[%s9 + $0x24] sm:$0xf]
        %v1572 = vld [vmem:[%s9 + $0x28] sm:$0xf]
        %v1573 = vld [vmem:[%s9 + $0x2c] sm:$0xf]
        %v1574 = vld [vmem:[%s9 + $0x30] sm:$0xf]
        %v1575 = vld [vmem:[%s9 + $0x34] sm:$0xf]
        %v1576 = vld [vmem:[%s9 + $0x38] sm:$0xf]
        %v1592 = vunpack.c.l.b16 %v1562
        %v1593 = vunpack.c.l.b16 %v1563
        %v1594 = vunpack.c.l.b16 %v1564
        %v1595 = vunpack.c.l.b16 %v1565
        %v1596 = vunpack.c.l.b16 %v1566
        %v1597 = vunpack.c.l.b16 %v1567
        %v1598 = vunpack.c.l.b16 %v1568
        %v1599 = vunpack.c.l.b16 %v1569
        %v1600 = vunpack.c.l.b16 %v1570
        %v1601 = vunpack.c.l.b16 %v1571
        %v1602 = vunpack.c.l.b16 %v1572
        %v1603 = vunpack.c.l.b16 %v1573
        %v1604 = vunpack.c.l.b16 %v1574
        %v1605 = vunpack.c.l.b16 %v1575
        %v1606 = vunpack.c.l.b16 %v1576
        %v1607 = vpack.c.b16 %v1593, %v1592
        %v1608 = vpack.c.b16 %v1595, %v1594
        %v1609 = vpack.c.b16 %v1597, %v1596
        %v1610 = vpack.c.b16 %v1599, %v1598
        %v1611 = vpack.c.b16 %v1601, %v1600
        %v1612 = vpack.c.b16 %v1603, %v1602
        %v1613 = vpack.c.b16 %v1605, %v1604
        %v1614 = vpack.c.b16 %v1606, %v1606
        %vm1622 = vcmask 982016
        %v1624 = vsel %vm1622, %v1561, 0
        %v1627 = vsel %vm800, %v1614, 0
        %1629 = vmatprep.subr.bf16.mxu0 0
        %1630 = vmatpush1.bf16.msra.mxu0 %v1607
        %1631 = vmatprep.subr.bf16.mxu0 0
        %1632 = vmatpush1.bf16.msra.mxu0 %v1608
        %1633 = vmatprep.subr.bf16.mxu0 0
        %1634 = vmatpush1.bf16.msra.mxu0 %v1609
        %1635 = vmatprep.subr.bf16.mxu0 0
        %1636 = vmatpush1.bf16.msra.mxu0 %v1610
        %1637 = vmatprep.subr.bf16.mxu0 0
        %1638 = vmatpush1.bf16.msra.mxu0 %v1611
        %1639 = vmatprep.subr.bf16.mxu0 0
        %1640 = vmatpush1.bf16.msra.mxu0 %v1612
        %1641 = vmatprep.subr.bf16.mxu0 0
        %1642 = vmatpush1.bf16.msra.mxu0 %v1613
        %1643 = vmatprep.subr.bf16.mxu0 0
        %1644 = vmatpush1.bf16.msra.mxu0 %v1627
        %1645 = vmatprep.subr.bf16.mxu0 0
        %1646 = vmatpush1.bf16.msra.mxu0 0
        %1647 = vmatprep.subr.bf16.mxu0 0
        %1648 = vmatpush1.bf16.msra.mxu0 0
        %1649 = vmatprep.subr.bf16.mxu0 0
        %1650 = vmatpush1.bf16.msra.mxu0 0
        %1651 = vmatprep.subr.bf16.mxu0 0
        %1652 = vmatpush1.bf16.msra.mxu0 0
        %1653 = vmatprep.subr.bf16.mxu0 0
        %1654 = vmatpush1.bf16.msra.mxu0 0
        %1655 = vmatprep.subr.bf16.mxu0 0
        %1656 = vmatpush1.bf16.msra.mxu0 0
        %1657 = vmatprep.subr.bf16.mxu0 0
        %1658 = vmatpush1.bf16.msra.mxu0 0
        %1659 = vmatprep.subr.bf16.mxu0 0
        %1660 = vmatpush1.bf16.msra.mxu0 0
        %1661 = vmatprep.mubr.bf16.mxu0 0
        %1662 = vmatmul.mubr.bf16.gmra.mrb[0].mxu0 %v1624
        %v1663 = vpop.f32.mrb[0].mxu0
        %v1664 = vadd.f32 0.0, %v1663
        %v1665 = vpop.f32.mrb[0].mxu0
        %v1666 = vpop.f32.mrb[0].mxu0
        %v1667 = vpop.f32.mrb[0].mxu0
        %1668 = vdwg.mxu0
        %s1669 = scalar_lea.vmem %s9, 60
        %v1670 = vld [vmem:[%s1669] sm:$0xf]
        %v1671 = vld [vmem:[%s1669 + $0x4] sm:$0xf]
        %v1672 = vld [vmem:[%s1669 + $0x8] sm:$0xf]
        %v1673 = vld [vmem:[%s1669 + $0xc] sm:$0xf]
        %v1674 = vld [vmem:[%s1669 + $0x10] sm:$0xf]
        %v1675 = vld [vmem:[%s1669 + $0x14] sm:$0xf]
        %v1676 = vld [vmem:[%s1669 + $0x18] sm:$0xf]
        %v1677 = vld [vmem:[%s1669 + $0x1c] sm:$0xf]
        %v1678 = vld [vmem:[%s1669 + $0x20] sm:$0xf]
        %v1679 = vld [vmem:[%s1669 + $0x24] sm:$0xf]
        %v1680 = vld [vmem:[%s1669 + $0x28] sm:$0xf]
        %v1681 = vld [vmem:[%s1669 + $0x2c] sm:$0xf]
        %v1682 = vld [vmem:[%s1669 + $0x30] sm:$0xf]
        %v1683 = vld [vmem:[%s1669 + $0x34] sm:$0xf]
        %v1684 = vld [vmem:[%s1669 + $0x38] sm:$0xf]
        %v1700 = vunpack.c.l.b16 %v1670
        %v1701 = vunpack.c.l.b16 %v1671
        %v1702 = vunpack.c.l.b16 %v1672
        %v1703 = vunpack.c.l.b16 %v1673
        %v1704 = vunpack.c.l.b16 %v1674
        %v1705 = vunpack.c.l.b16 %v1675
        %v1706 = vunpack.c.l.b16 %v1676
        %v1707 = vunpack.c.l.b16 %v1677
        %v1708 = vunpack.c.l.b16 %v1678
        %v1709 = vunpack.c.l.b16 %v1679
        %v1710 = vunpack.c.l.b16 %v1680
        %v1711 = vunpack.c.l.b16 %v1681
        %v1712 = vunpack.c.l.b16 %v1682
        %v1713 = vunpack.c.l.b16 %v1683
        %v1714 = vunpack.c.l.b16 %v1684
        %v1715 = vpack.c.b16 %v1701, %v1700
        %v1716 = vpack.c.b16 %v1703, %v1702
        %v1717 = vpack.c.b16 %v1705, %v1704
        %v1718 = vpack.c.b16 %v1707, %v1706
        %v1719 = vpack.c.b16 %v1709, %v1708
        %v1720 = vpack.c.b16 %v1711, %v1710
        %v1721 = vpack.c.b16 %v1713, %v1712
        %v1722 = vpack.c.b16 %v1714, %v1714
        %v1731 = vsel %vm800, %v1722, 0
        %1733 = vmatprep.subr.bf16.mxu0 0
        %1734 = vmatpush1.bf16.msra.mxu0 %v1715
        %1735 = vmatprep.subr.bf16.mxu0 0
        %1736 = vmatpush1.bf16.msra.mxu0 %v1716
        %1737 = vmatprep.subr.bf16.mxu0 0
        %1738 = vmatpush1.bf16.msra.mxu0 %v1717
        %1739 = vmatprep.subr.bf16.mxu0 0
        %1740 = vmatpush1.bf16.msra.mxu0 %v1718
        %1741 = vmatprep.subr.bf16.mxu0 0
        %1742 = vmatpush1.bf16.msra.mxu0 %v1719
        %1743 = vmatprep.subr.bf16.mxu0 0
        %1744 = vmatpush1.bf16.msra.mxu0 %v1720
        %1745 = vmatprep.subr.bf16.mxu0 0
        %1746 = vmatpush1.bf16.msra.mxu0 %v1721
        %1747 = vmatprep.subr.bf16.mxu0 0
        %1748 = vmatpush1.bf16.msra.mxu0 %v1731
        %1749 = vmatprep.subr.bf16.mxu0 0
        %1750 = vmatpush1.bf16.msra.mxu0 0
        %1751 = vmatprep.subr.bf16.mxu0 0
        %1752 = vmatpush1.bf16.msra.mxu0 0
        %1753 = vmatprep.subr.bf16.mxu0 0
        %1754 = vmatpush1.bf16.msra.mxu0 0
        %1755 = vmatprep.subr.bf16.mxu0 0
        %1756 = vmatpush1.bf16.msra.mxu0 0
        %1757 = vmatprep.subr.bf16.mxu0 0
        %1758 = vmatpush1.bf16.msra.mxu0 0
        %1759 = vmatprep.subr.bf16.mxu0 0
        %1760 = vmatpush1.bf16.msra.mxu0 0
        %1761 = vmatprep.subr.bf16.mxu0 0
        %1762 = vmatpush1.bf16.msra.mxu0 0
        %1763 = vmatprep.subr.bf16.mxu0 0
        %1764 = vmatpush1.bf16.msra.mxu0 0
        %1765 = vmatprep.mubr.bf16.mxu0 0
        %1766 = vmatmul.mubr.bf16.gmra.mrb[0].mxu0 %v1624
        %v1767 = vpop.f32.mrb[0].mxu0
        %v1768 = vadd.f32 0.0, %v1767
        %v1769 = vpop.f32.mrb[0].mxu0
        %v1770 = vpop.f32.mrb[0].mxu0
        %v1771 = vpop.f32.mrb[0].mxu0
        %1772 = vdwg.mxu0
        %v1773 = vmax.f32 %v1664, %v1768
        %v1774 = vld [vmem:[%s10 + $0x1] sm:$0x1]
        %v1775 = vlaneseq
        %v1776 = vshrl.u32 %v1775, 7
        %v1777 = vsub.s32 0, %v1776
        %v1778 = vrot.slane %v1774, %v1777
        %v1779 = vadd.f32 %v1773, %v1778
        %v1780 = vmax.f32 %v1779, 0.0
        %v1781 = vpack.c.bf16 %v1780, %v1780
        %v1782 = vld [vmem:[%s3] sm:$0xf]
        %v1783 = vld [vmem:[%s3 + $0x4] sm:$0xf]
        %v1784 = vld [vmem:[%s3 + $0x8] sm:$0xf]
        %v1785 = vld [vmem:[%s3 + $0xc] sm:$0xf]
        %v1786 = vld [vmem:[%s3 + $0x10] sm:$0xf]
        %v1787 = vld [vmem:[%s3 + $0x14] sm:$0xf]
        %v1788 = vld [vmem:[%s3 + $0x18] sm:$0xf]
        %v1789 = vld [vmem:[%s3 + $0x1c] sm:$0x3]
        %s1790 = scalar_lea.vmem %s3, 32
        %v1791 = vld [vmem:[%s1790] sm:$0xf]
        %v1792 = vld [vmem:[%s1790 + $0x4] sm:$0xf]
        %v1793 = vld [vmem:[%s1790 + $0x8] sm:$0xf]
        %v1794 = vld [vmem:[%s1790 + $0xc] sm:$0xf]
        %v1795 = vld [vmem:[%s1790 + $0x10] sm:$0xf]
        %v1796 = vld [vmem:[%s1790 + $0x14] sm:$0xf]
        %v1797 = vld [vmem:[%s1790 + $0x18] sm:$0xf]
        %v1798 = vld [vmem:[%s1790 + $0x1c] sm:$0x3]
        %v1800 = vshrl.u32 %v1781, 16
        %v1810 = vunpack.c.l.b16 %v1791
        %v1811 = vunpack.c.l.b16 %v1792
        %v1812 = vunpack.c.l.b16 %v1793
        %v1813 = vunpack.c.l.b16 %v1794
        %v1814 = vunpack.c.l.b16 %v1795
        %v1815 = vunpack.c.l.b16 %v1796
        %v1816 = vunpack.c.l.b16 %v1797
        %v1817 = vunpack.c.l.b16 %v1798
        %v1818 = vpack.c.b16 %v1811, %v1810
        %v1819 = vpack.c.b16 %v1813, %v1812
        %v1820 = vpack.c.b16 %v1815, %v1814
        %v1821 = vpack.c.b16 %v1817, %v1816
        %vm1825 = vcmask 490496
        %v1827 = vsel %vm1825, %v1800, 0
        %v1830 = vsel %vm602, %v1821, 0
        %1832 = vmatprep.subr.bf16.mxu0 0
        %1833 = vmatpush1.bf16.msra.mxu0 %v1818
        %1834 = vmatprep.subr.bf16.mxu0 0
        %1835 = vmatpush1.bf16.msra.mxu0 %v1819
        %1836 = vmatprep.subr.bf16.mxu0 0
        %1837 = vmatpush1.bf16.msra.mxu0 %v1820
        %1838 = vmatprep.subr.bf16.mxu0 0
        %1839 = vmatpush1.bf16.msra.mxu0 %v1830
        %1840 = vmatprep.subr.bf16.mxu0 0
        %1841 = vmatpush1.bf16.msra.mxu0 0
        %1842 = vmatprep.subr.bf16.mxu0 0
        %1843 = vmatpush1.bf16.msra.mxu0 0
        %1844 = vmatprep.subr.bf16.mxu0 0
        %1845 = vmatpush1.bf16.msra.mxu0 0
        %1846 = vmatprep.subr.bf16.mxu0 0
        %1847 = vmatpush1.bf16.msra.mxu0 0
        %1848 = vmatprep.subr.bf16.mxu0 0
        %1849 = vmatpush1.bf16.msra.mxu0 0
        %1850 = vmatprep.subr.bf16.mxu0 0
        %1851 = vmatpush1.bf16.msra.mxu0 0
        %1852 = vmatprep.subr.bf16.mxu0 0
        %1853 = vmatpush1.bf16.msra.mxu0 0
        %1854 = vmatprep.subr.bf16.mxu0 0
        %1855 = vmatpush1.bf16.msra.mxu0 0
        %1856 = vmatprep.subr.bf16.mxu0 0
        %1857 = vmatpush1.bf16.msra.mxu0 0
        %1858 = vmatprep.subr.bf16.mxu0 0
        %1859 = vmatpush1.bf16.msra.mxu0 0
        %1860 = vmatprep.subr.bf16.mxu0 0
        %1861 = vmatpush1.bf16.msra.mxu0 0
        %1862 = vmatprep.subr.bf16.mxu0 0
        %1863 = vmatpush1.bf16.msra.mxu0 0
        %1864 = vmatprep.mubr.bf16.mxu0 0
        %1865 = vmatmul.mubr.bf16.gmra.mrb[0].mxu0 %v1827
        %v1866 = vpop.f32.mrb[0].mxu0
        %v1867 = vadd.f32 0.0, %v1866
        %v1868 = vpop.f32.mrb[0].mxu0
        %v1869 = vpop.f32.mrb[0].mxu0
        %v1870 = vpop.f32.mrb[0].mxu0
        %1871 = vdwg.mxu0
        %v1880 = vunpack.c.l.b16 %v1782
        %v1881 = vunpack.c.l.b16 %v1783
        %v1882 = vunpack.c.l.b16 %v1784
        %v1883 = vunpack.c.l.b16 %v1785
        %v1884 = vunpack.c.l.b16 %v1786
        %v1885 = vunpack.c.l.b16 %v1787
        %v1886 = vunpack.c.l.b16 %v1788
        %v1887 = vunpack.c.l.b16 %v1789
        %v1888 = vpack.c.b16 %v1881, %v1880
        %v1889 = vpack.c.b16 %v1883, %v1882
        %v1890 = vpack.c.b16 %v1885, %v1884
        %v1891 = vpack.c.b16 %v1887, %v1886
        %v1895 = vsel %vm1825, %v1781, 0
        %v1898 = vsel %vm602, %v1891, 0
        %1900 = vmatprep.subr.bf16.mxu0 0
        %1901 = vmatpush1.bf16.msra.mxu0 %v1888
        %1902 = vmatprep.subr.bf16.mxu0 0
        %1903 = vmatpush1.bf16.msra.mxu0 %v1889
        %1904 = vmatprep.subr.bf16.mxu0 0
        %1905 = vmatpush1.bf16.msra.mxu0 %v1890
        %1906 = vmatprep.subr.bf16.mxu0 0
        %1907 = vmatpush1.bf16.msra.mxu0 %v1898
        %1908 = vmatprep.subr.bf16.mxu0 0
        %1909 = vmatpush1.bf16.msra.mxu0 0
        %1910 = vmatprep.subr.bf16.mxu0 0
        %1911 = vmatpush1.bf16.msra.mxu0 0
        %1912 = vmatprep.subr.bf16.mxu0 0
        %1913 = vmatpush1.bf16.msra.mxu0 0
        %1914 = vmatprep.subr.bf16.mxu0 0
        %1915 = vmatpush1.bf16.msra.mxu0 0
        %1916 = vmatprep.subr.bf16.mxu0 0
        %1917 = vmatpush1.bf16.msra.mxu0 0
        %1918 = vmatprep.subr.bf16.mxu0 0
        %1919 = vmatpush1.bf16.msra.mxu0 0
        %1920 = vmatprep.subr.bf16.mxu0 0
        %1921 = vmatpush1.bf16.msra.mxu0 0
        %1922 = vmatprep.subr.bf16.mxu0 0
        %1923 = vmatpush1.bf16.msra.mxu0 0
        %1924 = vmatprep.subr.bf16.mxu0 0
        %1925 = vmatpush1.bf16.msra.mxu0 0
        %1926 = vmatprep.subr.bf16.mxu0 0
        %1927 = vmatpush1.bf16.msra.mxu0 0
        %1928 = vmatprep.subr.bf16.mxu0 0
        %1929 = vmatpush1.bf16.msra.mxu0 0
        %1930 = vmatprep.subr.bf16.mxu0 0
        %1931 = vmatpush1.bf16.msra.mxu0 0
        %1932 = vmatprep.mubr.bf16.mxu0 0
        %1933 = vmatmul.mubr.bf16.gmra.mrb[0].mxu0 %v1895
        %v1934 = vpop.f32.mrb[0].mxu0
        %v1935 = vadd.f32 %v1867, %v1934
        %v1936 = vpop.f32.mrb[0].mxu0
        %v1937 = vpop.f32.mrb[0].mxu0
        %v1938 = vpop.f32.mrb[0].mxu0
        %1939 = vdwg.mxu0
        %s1940 = scalar_lea.vmem %s3, 64
        %v1941 = vld [vmem:[%s1940] sm:$0xf]
        %v1942 = vld [vmem:[%s1940 + $0x4] sm:$0xf]
        %v1943 = vld [vmem:[%s1940 + $0x8] sm:$0xf]
        %v1944 = vld [vmem:[%s1940 + $0xc] sm:$0xf]
        %v1945 = vld [vmem:[%s1940 + $0x10] sm:$0xf]
        %v1946 = vld [vmem:[%s1940 + $0x14] sm:$0xf]
        %v1947 = vld [vmem:[%s1940 + $0x18] sm:$0xf]
        %v1948 = vld [vmem:[%s1940 + $0x1c] sm:$0x3]
        %v1950 = vrot.slane %v1781, 1
        %v1959 = vunpack.c.l.b16 %v1941
        %v1960 = vunpack.c.l.b16 %v1942
        %v1961 = vunpack.c.l.b16 %v1943
        %v1962 = vunpack.c.l.b16 %v1944
        %v1963 = vunpack.c.l.b16 %v1945
        %v1964 = vunpack.c.l.b16 %v1946
        %v1965 = vunpack.c.l.b16 %v1947
        %v1966 = vunpack.c.l.b16 %v1948
        %v1967 = vpack.c.b16 %v1960, %v1959
        %v1968 = vpack.c.b16 %v1962, %v1961
        %v1969 = vpack.c.b16 %v1964, %v1963
        %v1970 = vpack.c.b16 %v1966, %v1965
        %v1975 = vsel %vm1825, %v1950, 0
        %v1978 = vsel %vm602, %v1970, 0
        %1980 = vmatprep.subr.bf16.mxu0 0
        %1981 = vmatpush1.bf16.msra.mxu0 %v1967
        %1982 = vmatprep.subr.bf16.mxu0 0
        %1983 = vmatpush1.bf16.msra.mxu0 %v1968
        %1984 = vmatprep.subr.bf16.mxu0 0
        %1985 = vmatpush1.bf16.msra.mxu0 %v1969
        %1986 = vmatprep.subr.bf16.mxu0 0
        %1987 = vmatpush1.bf16.msra.mxu0 %v1978
        %1988 = vmatprep.subr.bf16.mxu0 0
        %1989 = vmatpush1.bf16.msra.mxu0 0
        %1990 = vmatprep.subr.bf16.mxu0 0
        %1991 = vmatpush1.bf16.msra.mxu0 0
        %1992 = vmatprep.subr.bf16.mxu0 0
        %1993 = vmatpush1.bf16.msra.mxu0 0
        %1994 = vmatprep.subr.bf16.mxu0 0
        %1995 = vmatpush1.bf16.msra.mxu0 0
        %1996 = vmatprep.subr.bf16.mxu0 0
        %1997 = vmatpush1.bf16.msra.mxu0 0
        %1998 = vmatprep.subr.bf16.mxu0 0
        %1999 = vmatpush1.bf16.msra.mxu0 0
        %2000 = vmatprep.subr.bf16.mxu0 0
        %2001 = vmatpush1.bf16.msra.mxu0 0
        %2002 = vmatprep.subr.bf16.mxu0 0
        %2003 = vmatpush1.bf16.msra.mxu0 0
        %2004 = vmatprep.subr.bf16.mxu0 0
        %2005 = vmatpush1.bf16.msra.mxu0 0
        %2006 = vmatprep.subr.bf16.mxu0 0
        %2007 = vmatpush1.bf16.msra.mxu0 0
        %2008 = vmatprep.subr.bf16.mxu0 0
        %2009 = vmatpush1.bf16.msra.mxu0 0
        %2010 = vmatprep.subr.bf16.mxu0 0
        %2011 = vmatpush1.bf16.msra.mxu0 0
        %2012 = vmatprep.mubr.bf16.mxu0 0
        %2013 = vmatmul.mubr.bf16.gmra.mrb[0].mxu0 %v1975
        %v2014 = vpop.f32.mrb[0].mxu0
        %v2015 = vadd.f32 0.0, %v2014
        %v2016 = vpop.f32.mrb[0].mxu0
        %v2017 = vpop.f32.mrb[0].mxu0
        %v2018 = vpop.f32.mrb[0].mxu0
        %2019 = vdwg.mxu0
        %v2020 = vadd.f32 %v1935, %v2015
        %s2021 = scalar_lea.vmem %s3, 96
        %v2022 = vld [vmem:[%s2021] sm:$0xf]
        %v2023 = vld [vmem:[%s2021 + $0x4] sm:$0xf]
        %v2024 = vld [vmem:[%s2021 + $0x8] sm:$0xf]
        %v2025 = vld [vmem:[%s2021 + $0xc] sm:$0xf]
        %v2026 = vld [vmem:[%s2021 + $0x10] sm:$0xf]
        %v2027 = vld [vmem:[%s2021 + $0x14] sm:$0xf]
        %v2028 = vld [vmem:[%s2021 + $0x18] sm:$0xf]
        %v2029 = vld [vmem:[%s2021 + $0x1c] sm:$0x3]
        %v2030 = vrot.slane %v1800, 1
        %v2039 = vunpack.c.l.b16 %v2022
        %v2040 = vunpack.c.l.b16 %v2023
        %v2041 = vunpack.c.l.b16 %v2024
        %v2042 = vunpack.c.l.b16 %v2025
        %v2043 = vunpack.c.l.b16 %v2026
        %v2044 = vunpack.c.l.b16 %v2027
        %v2045 = vunpack.c.l.b16 %v2028
        %v2046 = vunpack.c.l.b16 %v2029
        %v2047 = vpack.c.b16 %v2040, %v2039
        %v2048 = vpack.c.b16 %v2042, %v2041
        %v2049 = vpack.c.b16 %v2044, %v2043
        %v2050 = vpack.c.b16 %v2046, %v2045
        %v2055 = vsel %vm1825, %v2030, 0
        %v2058 = vsel %vm602, %v2050, 0
        %2060 = vmatprep.subr.bf16.mxu0 0
        %2061 = vmatpush1.bf16.msra.mxu0 %v2047
        %2062 = vmatprep.subr.bf16.mxu0 0
        %2063 = vmatpush1.bf16.msra.mxu0 %v2048
        %2064 = vmatprep.subr.bf16.mxu0 0
        %2065 = vmatpush1.bf16.msra.mxu0 %v2049
        %2066 = vmatprep.subr.bf16.mxu0 0
        %2067 = vmatpush1.bf16.msra.mxu0 %v2058
        %2068 = vmatprep.subr.bf16.mxu0 0
        %2069 = vmatpush1.bf16.msra.mxu0 0
        %2070 = vmatprep.subr.bf16.mxu0 0
        %2071 = vmatpush1.bf16.msra.mxu0 0
        %2072 = vmatprep.subr.bf16.mxu0 0
        %2073 = vmatpush1.bf16.msra.mxu0 0
        %2074 = vmatprep.subr.bf16.mxu0 0
        %2075 = vmatpush1.bf16.msra.mxu0 0
        %2076 = vmatprep.subr.bf16.mxu0 0
        %2077 = vmatpush1.bf16.msra.mxu0 0
        %2078 = vmatprep.subr.bf16.mxu0 0
        %2079 = vmatpush1.bf16.msra.mxu0 0
        %2080 = vmatprep.subr.bf16.mxu0 0
        %2081 = vmatpush1.bf16.msra.mxu0 0
        %2082 = vmatprep.subr.bf16.mxu0 0
        %2083 = vmatpush1.bf16.msra.mxu0 0
        %2084 = vmatprep.subr.bf16.mxu0 0
        %2085 = vmatpush1.bf16.msra.mxu0 0
        %2086 = vmatprep.subr.bf16.mxu0 0
        %2087 = vmatpush1.bf16.msra.mxu0 0
        %2088 = vmatprep.subr.bf16.mxu0 0
        %2089 = vmatpush1.bf16.msra.mxu0 0
        %2090 = vmatprep.subr.bf16.mxu0 0
        %2091 = vmatpush1.bf16.msra.mxu0 0
        %2092 = vmatprep.mubr.bf16.mxu0 0
        %2093 = vmatmul.mubr.bf16.gmra.mrb[0].mxu0 %v2055
        %v2094 = vpop.f32.mrb[0].mxu0
        %v2095 = vadd.f32 0.0, %v2094
        %v2096 = vpop.f32.mrb[0].mxu0
        %v2097 = vpop.f32.mrb[0].mxu0
        %v2098 = vpop.f32.mrb[0].mxu0
        %2099 = vdwg.mxu0
        %v2100 = vadd.f32 %v2020, %v2095
        %s2101 = scalar_lea.vmem %s3, 128
        %v2102 = vld [vmem:[%s2101] sm:$0xf]
        %v2103 = vld [vmem:[%s2101 + $0x4] sm:$0xf]
        %v2104 = vld [vmem:[%s2101 + $0x8] sm:$0xf]
        %v2105 = vld [vmem:[%s2101 + $0xc] sm:$0xf]
        %v2106 = vld [vmem:[%s2101 + $0x10] sm:$0xf]
        %v2107 = vld [vmem:[%s2101 + $0x14] sm:$0xf]
        %v2108 = vld [vmem:[%s2101 + $0x18] sm:$0xf]
        %v2109 = vld [vmem:[%s2101 + $0x1c] sm:$0x3]
        %v2110 = vrot.slane %v1781, 2
        %v2119 = vunpack.c.l.b16 %v2102
        %v2120 = vunpack.c.l.b16 %v2103
        %v2121 = vunpack.c.l.b16 %v2104
        %v2122 = vunpack.c.l.b16 %v2105
        %v2123 = vunpack.c.l.b16 %v2106
        %v2124 = vunpack.c.l.b16 %v2107
        %v2125 = vunpack.c.l.b16 %v2108
        %v2126 = vunpack.c.l.b16 %v2109
        %v2127 = vpack.c.b16 %v2120, %v2119
        %v2128 = vpack.c.b16 %v2122, %v2121
        %v2129 = vpack.c.b16 %v2124, %v2123
        %v2130 = vpack.c.b16 %v2126, %v2125
        %v2135 = vsel %vm1825, %v2110, 0
        %v2138 = vsel %vm602, %v2130, 0
        %2140 = vmatprep.subr.bf16.mxu0 0
        %2141 = vmatpush1.bf16.msra.mxu0 %v2127
        %2142 = vmatprep.subr.bf16.mxu0 0
        %2143 = vmatpush1.bf16.msra.mxu0 %v2128
        %2144 = vmatprep.subr.bf16.mxu0 0
        %2145 = vmatpush1.bf16.msra.mxu0 %v2129
        %2146 = vmatprep.subr.bf16.mxu0 0
        %2147 = vmatpush1.bf16.msra.mxu0 %v2138
        %2148 = vmatprep.subr.bf16.mxu0 0
        %2149 = vmatpush1.bf16.msra.mxu0 0
        %2150 = vmatprep.subr.bf16.mxu0 0
        %2151 = vmatpush1.bf16.msra.mxu0 0
        %2152 = vmatprep.subr.bf16.mxu0 0
        %2153 = vmatpush1.bf16.msra.mxu0 0
        %2154 = vmatprep.subr.bf16.mxu0 0
        %2155 = vmatpush1.bf16.msra.mxu0 0
        %2156 = vmatprep.subr.bf16.mxu0 0
        %2157 = vmatpush1.bf16.msra.mxu0 0
        %2158 = vmatprep.subr.bf16.mxu0 0
        %2159 = vmatpush1.bf16.msra.mxu0 0
        %2160 = vmatprep.subr.bf16.mxu0 0
        %2161 = vmatpush1.bf16.msra.mxu0 0
        %2162 = vmatprep.subr.bf16.mxu0 0
        %2163 = vmatpush1.bf16.msra.mxu0 0
        %2164 = vmatprep.subr.bf16.mxu0 0
        %2165 = vmatpush1.bf16.msra.mxu0 0
        %2166 = vmatprep.subr.bf16.mxu0 0
        %2167 = vmatpush1.bf16.msra.mxu0 0
        %2168 = vmatprep.subr.bf16.mxu0 0
        %2169 = vmatpush1.bf16.msra.mxu0 0
        %2170 = vmatprep.subr.bf16.mxu0 0
        %2171 = vmatpush1.bf16.msra.mxu0 0
        %2172 = vmatprep.mubr.bf16.mxu0 0
        %2173 = vmatmul.mubr.bf16.gmra.mrb[0].mxu0 %v2135
        %v2174 = vpop.f32.mrb[0].mxu0
        %v2175 = vadd.f32 0.0, %v2174
        %v2176 = vpop.f32.mrb[0].mxu0
        %v2177 = vpop.f32.mrb[0].mxu0
        %v2178 = vpop.f32.mrb[0].mxu0
        %2179 = vdwg.mxu0
        %v2180 = vadd.f32 %v2100, %v2175
        %v2181 = vld [vmem:[%s10 + $0x2] sm:$0x1]
        %v2182 = vadd.f32 %v2180, %v2181
        %v2183 = vmax.f32 %v2182, 0.0
        %v2184 = vpack.c.bf16 %v2183, %v2183
        %v2185 = vld [vmem:[%s4] sm:$0xf]
        %v2186 = vld [vmem:[%s4 + $0x4] sm:$0xf]
        %v2187 = vld [vmem:[%s4 + $0x8] sm:$0xf]
        %v2188 = vld [vmem:[%s4 + $0xc] sm:$0xf]
        %v2189 = vld [vmem:[%s4 + $0x10] sm:$0xf]
        %v2190 = vld [vmem:[%s4 + $0x14] sm:$0xf]
        %v2191 = vld [vmem:[%s4 + $0x18] sm:$0xf]
        %v2192 = vld [vmem:[%s4 + $0x1c] sm:$0xf]
        %v2193 = vld [vmem:[%s4 + $0x20] sm:$0xf]
        %v2194 = vld [vmem:[%s4 + $0x24] sm:$0xf]
        %v2195 = vld [vmem:[%s4 + $0x28] sm:$0xf]
        %v2196 = vld [vmem:[%s4 + $0x2c] sm:$0xf]
        %v2197 = vld [vmem:[%s4 + $0x30] sm:$0xf]
        %v2198 = vld [vmem:[%s4 + $0x34] sm:$0xf]
        %v2199 = vld [vmem:[%s4 + $0x38] sm:$0xf]
        %v2200 = vld [vmem:[%s10 + $0x3] sm:$0x1]
        %v2216 = vunpack.c.l.b16 %v2185
        %v2217 = vunpack.c.l.b16 %v2186
        %v2218 = vunpack.c.l.b16 %v2187
        %v2219 = vunpack.c.l.b16 %v2188
        %v2220 = vunpack.c.l.b16 %v2189
        %v2221 = vunpack.c.l.b16 %v2190
        %v2222 = vunpack.c.l.b16 %v2191
        %v2223 = vunpack.c.l.b16 %v2192
        %v2224 = vunpack.c.l.b16 %v2193
        %v2225 = vunpack.c.l.b16 %v2194
        %v2226 = vunpack.c.l.b16 %v2195
        %v2227 = vunpack.c.l.b16 %v2196
        %v2228 = vunpack.c.l.b16 %v2197
        %v2229 = vunpack.c.l.b16 %v2198
        %v2230 = vunpack.c.l.b16 %v2199
        %v2231 = vpack.c.b16 %v2217, %v2216
        %v2232 = vpack.c.b16 %v2219, %v2218
        %v2233 = vpack.c.b16 %v2221, %v2220
        %v2234 = vpack.c.b16 %v2223, %v2222
        %v2235 = vpack.c.b16 %v2225, %v2224
        %v2236 = vpack.c.b16 %v2227, %v2226
        %v2237 = vpack.c.b16 %v2229, %v2228
        %v2238 = vpack.c.b16 %v2230, %v2230
        %v2247 = vsel %vm1622, %v2184, 0
        %v2250 = vsel %vm800, %v2238, 0
        %2252 = vmatprep.subr.bf16.mxu0 0
        %2253 = vmatpush1.bf16.msra.mxu0 %v2231
        %2254 = vmatprep.subr.bf16.mxu0 0
        %2255 = vmatpush1.bf16.msra.mxu0 %v2232
        %2256 = vmatprep.subr.bf16.mxu0 0
        %2257 = vmatpush1.bf16.msra.mxu0 %v2233
        %2258 = vmatprep.subr.bf16.mxu0 0
        %2259 = vmatpush1.bf16.msra.mxu0 %v2234
        %2260 = vmatprep.subr.bf16.mxu0 0
        %2261 = vmatpush1.bf16.msra.mxu0 %v2235
        %2262 = vmatprep.subr.bf16.mxu0 0
        %2263 = vmatpush1.bf16.msra.mxu0 %v2236
        %2264 = vmatprep.subr.bf16.mxu0 0
        %2265 = vmatpush1.bf16.msra.mxu0 %v2237
        %2266 = vmatprep.subr.bf16.mxu0 0
        %2267 = vmatpush1.bf16.msra.mxu0 %v2250
        %2268 = vmatprep.subr.bf16.mxu0 0
        %2269 = vmatpush1.bf16.msra.mxu0 0
        %2270 = vmatprep.subr.bf16.mxu0 0
        %2271 = vmatpush1.bf16.msra.mxu0 0
        %2272 = vmatprep.subr.bf16.mxu0 0
        %2273 = vmatpush1.bf16.msra.mxu0 0
        %2274 = vmatprep.subr.bf16.mxu0 0
        %2275 = vmatpush1.bf16.msra.mxu0 0
        %2276 = vmatprep.subr.bf16.mxu0 0
        %2277 = vmatpush1.bf16.msra.mxu0 0
        %2278 = vmatprep.subr.bf16.mxu0 0
        %2279 = vmatpush1.bf16.msra.mxu0 0
        %2280 = vmatprep.subr.bf16.mxu0 0
        %2281 = vmatpush1.bf16.msra.mxu0 0
        %2282 = vmatprep.subr.bf16.mxu0 0
        %2283 = vmatpush1.bf16.msra.mxu0 0
        %2284 = vmatprep.mubr.bf16.mxu0 0
        %2285 = vmatmul.mubr.bf16.gmra.mrb[0].mxu0 %v2247
        %v2286 = vpop.f32.mrb[0].mxu0
        %v2287 = vadd.f32 %v2200, %v2286
        %v2288 = vpop.f32.mrb[0].mxu0
        %v2289 = vpop.f32.mrb[0].mxu0
        %v2290 = vpop.f32.mrb[0].mxu0
        %2291 = vdwg.mxu0
        %v2292 = vmax.f32 %v2287, 0.0
        %v2293 = vpack.c.bf16 %v2292, %v2292
        %v2294 = vld [vmem:[%s5] sm:$0xf]
        %v2295 = vld [vmem:[%s5 + $0x4] sm:$0xf]
        %v2296 = vld [vmem:[%s5 + $0x8] sm:$0xf]
        %v2297 = vld [vmem:[%s5 + $0xc] sm:$0xf]
        %v2298 = vld [vmem:[%s5 + $0x10] sm:$0xf]
        %v2299 = vld [vmem:[%s5 + $0x14] sm:$0xf]
        %v2300 = vld [vmem:[%s5 + $0x18] sm:$0xf]
        %v2301 = vld [vmem:[%s5 + $0x1c] sm:$0xf]
        %v2302 = vld [vmem:[%s5 + $0x20] sm:$0xf]
        %v2303 = vld [vmem:[%s5 + $0x24] sm:$0xf]
        %v2304 = vld [vmem:[%s5 + $0x28] sm:$0x3]
        %v2305 = vld [vmem:[%s10 + $0x4] sm:$0x1]
        %v2317 = vunpack.c.l.b16 %v2294
        %v2318 = vunpack.c.l.b16 %v2295
        %v2319 = vunpack.c.l.b16 %v2296
        %v2320 = vunpack.c.l.b16 %v2297
        %v2321 = vunpack.c.l.b16 %v2298
        %v2322 = vunpack.c.l.b16 %v2299
        %v2323 = vunpack.c.l.b16 %v2300
        %v2324 = vunpack.c.l.b16 %v2301
        %v2325 = vunpack.c.l.b16 %v2302
        %v2326 = vunpack.c.l.b16 %v2303
        %v2327 = vunpack.c.l.b16 %v2304
        %v2328 = vpack.c.b16 %v2318, %v2317
        %v2329 = vpack.c.b16 %v2320, %v2319
        %v2330 = vpack.c.b16 %v2322, %v2321
        %v2331 = vpack.c.b16 %v2324, %v2323
        %v2332 = vpack.c.b16 %v2326, %v2325
        %v2333 = vpack.c.b16 %v2327, %v2327
        %v2340 = vsel %vm1049, %v2293, 0
        %v2343 = vsel %vm1053, %v2333, 0
        %2345 = vmatprep.subr.bf16.mxu0 0
        %2346 = vmatpush1.bf16.msra.mxu0 %v2328
        %2347 = vmatprep.subr.bf16.mxu0 0
        %2348 = vmatpush1.bf16.msra.mxu0 %v2329
        %2349 = vmatprep.subr.bf16.mxu0 0
        %2350 = vmatpush1.bf16.msra.mxu0 %v2330
        %2351 = vmatprep.subr.bf16.mxu0 0
        %2352 = vmatpush1.bf16.msra.mxu0 %v2331
        %2353 = vmatprep.subr.bf16.mxu0 0
        %2354 = vmatpush1.bf16.msra.mxu0 %v2332
        %2355 = vmatprep.subr.bf16.mxu0 0
        %2356 = vmatpush1.bf16.msra.mxu0 %v2343
        %2357 = vmatprep.subr.bf16.mxu0 0
        %2358 = vmatpush1.bf16.msra.mxu0 0
        %2359 = vmatprep.subr.bf16.mxu0 0
        %2360 = vmatpush1.bf16.msra.mxu0 0
        %2361 = vmatprep.subr.bf16.mxu0 0
        %2362 = vmatpush1.bf16.msra.mxu0 0
        %2363 = vmatprep.subr.bf16.mxu0 0
        %2364 = vmatpush1.bf16.msra.mxu0 0
        %2365 = vmatprep.subr.bf16.mxu0 0
        %2366 = vmatpush1.bf16.msra.mxu0 0
        %2367 = vmatprep.subr.bf16.mxu0 0
        %2368 = vmatpush1.bf16.msra.mxu0 0
        %2369 = vmatprep.subr.bf16.mxu0 0
        %2370 = vmatpush1.bf16.msra.mxu0 0
        %2371 = vmatprep.subr.bf16.mxu0 0
        %2372 = vmatpush1.bf16.msra.mxu0 0
        %2373 = vmatprep.subr.bf16.mxu0 0
        %2374 = vmatpush1.bf16.msra.mxu0 0
        %2375 = vmatprep.subr.bf16.mxu0 0
        %2376 = vmatpush1.bf16.msra.mxu0 0
        %2377 = vmatprep.mubr.bf16.mxu0 0
        %2378 = vmatmul.mubr.bf16.gmra.mrb[0].mxu0 %v2340
        %v2379 = vpop.f32.mrb[0].mxu0
        %v2380 = vadd.f32 %v2305, %v2379
        %v2381 = vpop.f32.mrb[0].mxu0
        %v2382 = vpop.f32.mrb[0].mxu0
        %v2383 = vpop.f32.mrb[0].mxu0
        %2384 = vdwg.mxu0
        %2385 = vst [vmem:[%s378] sm:$0x1] %v2380
        %s2386 = sand.u32 %s269, 1
        %s2387 = scalar_lea.sflag [#allocation3], %s2386
        %s2388 = sand.u32 %s269, 1
        %s2389 = scalar_lea.vmem [#allocation2], %s2388
        // Predicated region
        $region65: #{cnn_target_1d_forward.1} parent=63 // pred_check
          %p2390 = pneg %p279
        $region66: #{cnn_target_1d_forward.1} parent=63 // pred_check_branch
          %2392 = sbr.rel (%p2390) target = $region68
        $region67: #{cnn_target_1d_forward.1} parent=63 // pred_region
          %s2394 = ssub.s32 16, 16
          %2395 = vsyncadd %s2387, %s2394
          %s2396 = smul.addr %s25, 16
          %s2397 = scalar_lea.hbm %s11, %s2396
          %s2399 = sshll.u32 %s2389, 4
          %s2400 = int_to_ptr.vmem [resolvable:$true] %s2399
          %2402 = dma.vmem_to_hbm [thread:$0]  %s2400, 16, %s2397, %s2387
        $region68: #{cnn_target_1d_forward.1} parent=63 // pred_fallthru
          _
      $region64: #{cnn_target_1d_forward.1} parent=5 // pred_fallthru
        _
      %p2403 = scmp.le.s32.totalorder 2, %s20
      // Predicated region
      $region69: #{cnn_target_1d_forward.1} parent=5 // pred_check
        %p2404 = pneg %p2403
      $region70: #{cnn_target_1d_forward.1} parent=5 // pred_check_branch
        %2406 = sbr.rel (%p2404) target = $region72
      $region71: #{cnn_target_1d_forward.1} parent=5 // pred_region
        %s2407 = ssub.s32 %s20, 2
        // Predicated region
        $region73: #{cnn_target_1d_forward.1} parent=71 // pred_check
          %p2408 = pneg %p285
        $region74: #{cnn_target_1d_forward.1} parent=71 // pred_check_branch
          %2410 = sbr.rel (%p2408) target = $region76
        $region75: #{cnn_target_1d_forward.1} parent=71 // pred_region
          %s2411 = sand.u32 %s270, 1
          %s2412 = scalar_lea.sflag [#allocation3], %s2411
          %s2413 = sand.u32 %s270, 1
          %s2414 = scalar_lea.vmem [#allocation2], %s2413
          %2415 = dma.done %s2412, 16
        $region76: #{cnn_target_1d_forward.1} parent=71 // pred_fallthru
          _
      $region72: #{cnn_target_1d_forward.1} parent=5 // pred_fallthru
        _
    $region6: #{cnn_target_1d_forward.1} parent=1 // loop_footer
      %s24 = sadd.s32 1, %s20
    $region7: #{cnn_target_1d_forward.1} parent=1 // loop_footer_branch
      %19 = sbr.rel target = $region3
    $region8: #{cnn_target_1d_forward.1} parent=1 // loop_exit
      _
    %2416 = vsyncpa [#allocation3], 1
    %s2417 = scalar_lea.sflag [#allocation3], 1
    %2418 = vsyncpa %s2417, 1

</llo_original>
